<compile_context>
chip_gen: v5e
topology: v5e:2x2
jax: 0.10.0
libtpu: 0.0.40
codegen_flags: <defaults>
</compile_context>

<pallas_src>
import functools

import numpy as np
import jax
import jax.numpy as jnp
from jax import lax
from jax.experimental import pallas as pl
from jax.experimental.pallas import tpu as pltpu


# Zero margin (in lanes) on both sides of each sample's activation band.  It
# implements the transposed-conv zero padding for free (shifted im2col reads
# fall into the zero margin) and keeps activation *writes* lane-aligned when
# L is a multiple of 128.
_MARGIN = 128


def _round_up(x, m):
    return (x + m - 1) // m * m


# ---------------------------------------------------------------------------
# Fused decoder kernel (one batch tile of `b_tile` samples per grid step)
# ---------------------------------------------------------------------------
def _decoder_kernel(*refs, layers, y_dim, l_seq, margin, b_tile, y_row0):
    """refs = (x_ref, y_ref, <per-layer params...>, o_ref, x2col_ref, act_ref)

    per-layer params: W (cout, k*rpt) bf16 (bias folded into column cin_tot),
                      [gamma (cout,1), beta (cout,1)] f32   (non-last only)
    act_ref  : (max_rows, B*(L+2*margin)) bf16; sample b lives in columns
               [b*W + margin, b*W + margin + L); margins stay zero.
               Rows [0, cin) = current activation; rows [y_row0, y_row0+y_dim)
               = fixed home of the conditioning y.
    x2col_ref: (max_K, B*L) bf16; im2col matrix of the current layer.
    """
    x_ref, y_ref = refs[0], refs[1]
    o_ref, x2col_ref, act_ref = refs[-3], refs[-2], refs[-1]
    param_refs = refs[2:-3]

    w_cols = l_seq + 2 * margin          # per-sample column stride in act_ref
    cols = b_tile * l_seq                # total im2col / output columns

    # One-time zero (scratch persists across grid steps): the margins supply
    # the conv zero padding, and padded im2col rows must hold *finite* values
    # (they multiply all-zero weight columns, so they contribute 0).
    @pl.when(pl.program_id(0) == 0)
    def _init():
        act_ref[...] = jnp.zeros(act_ref.shape, act_ref.dtype)
        x2col_ref[...] = jnp.zeros(x2col_ref.shape, x2col_ref.dtype)

    # Stage inputs once per grid step: x channels into rows [0, cin0), y into
    # its fixed row band (broadcast once -> no per-layer re-broadcast/store).
    cin0 = layers[0]['cin']
    for b in range(b_tile):
        c0 = b * w_cols + margin
        act_ref[0:cin0, c0:c0 + l_seq] = x_ref[b]
        act_ref[y_row0:y_row0 + y_dim, c0:c0 + l_seq] = jnp.broadcast_to(
            y_ref[b], (y_dim, l_seq))

    pidx = 0
    for cfg in layers:
        cin, cout = cfg['cin'], cfg['cout']
        k, p, rpt = cfg['k'], cfg['p'], cfg['rpt']
        cin_tot = cin + y_dim
        kk = k * rpt

        w_ref = param_refs[pidx]
        pidx += 1
        if not cfg['last']:
            g_ref, t_ref = param_refs[pidx], param_refs[pidx + 1]
            pidx += 2

        # Bias row: constant 1.0 at flat row cin_tot (tap block 0); the bias
        # lives in the matching column of w_mxu, so the MXU adds it for free.
        x2col_ref[cin_tot:cin_tot + 1, :] = jnp.ones((1, cols),
                                                     x2col_ref.dtype)

        # im2col: per tap j, shifted lane reads of the x rows and of the fixed
        # y rows (zero margins implement the transposed-conv zero padding,
        # for the y channels too, exactly like torch.cat + padded conv).
        for j in range(k):
            s = j - p
            r0 = j * rpt
            for b in range(b_tile):
                src = b * w_cols + margin - s
                dst = b * l_seq
                x2col_ref[r0:r0 + cin, dst:dst + l_seq] = (
                    act_ref[0:cin, src:src + l_seq])
                x2col_ref[r0 + cin:r0 + cin_tot, dst:dst + l_seq] = (
                    act_ref[y_row0:y_row0 + y_dim, src:src + l_seq])

        # One MXU contraction per layer: bf16 x bf16 -> f32 accumulation.
        h = jnp.dot(w_ref[...], x2col_ref[0:kk, :],
                    preferred_element_type=jnp.float32)        # (cout, B*L)

        if cfg['last']:
            # Final layer: plain ConvTranspose1d (bias already folded in).
            for b in range(b_tile):
                o_ref[b] = h[:, b * l_seq:(b + 1) * l_seq].astype(o_ref.dtype)
        else:
            ch = cout // 2
            cnt = float(cout * l_seq)
            for b in range(b_tile):
                hb = h[:, b * l_seq:(b + 1) * l_seq]
                # GroupNorm(1, cout): per-sample stats over (channels, time),
                # single pass (inputs are normalized-ish so E[x^2]-mu^2 is OK).
                mu = jnp.sum(hb) / cnt
                var = jnp.sum(hb * hb) / cnt - mu * mu
                inv = lax.rsqrt(var + cfg['eps'])
                scale = g_ref[...] * inv                       # (cout, 1)
                shift = t_ref[...] - mu * scale                # (cout, 1)
                hn = hb * scale + shift                        # fused affine
                glu = hn[:ch, :] * jax.nn.sigmoid(hn[ch:, :])  # GLU (channels)
                c0 = b * w_cols + margin
                act_ref[0:ch, c0:c0 + l_seq] = glu.astype(act_ref.dtype)


# ---------------------------------------------------------------------------
# Decoder (parameter setup + single fused pallas_call)
# ---------------------------------------------------------------------------
class PallasDecoder:
    """JAX/Pallas port of vqvae.model.vqvae.Decoder (forward only)."""

    def __init__(self, arch, y_dim, key, eps=1e-5):
        self.y_dim = y_dim
        self.eps = eps
        self.layers = []
        n_layers = len(arch['output'])
        keys = jax.random.split(key, n_layers)
        for idx, (ci, co, k, s) in enumerate(zip(arch['input'], arch['output'],
                                                 arch['kernel'], arch['stride'])):
            p = int((k - 1) / 2)
            # torch's forward concatenates y (repeated to the ORIGINAL length)
            # before every layer, so layers must preserve L -> stride 1, odd k.
            assert s == 1 and k % 2 == 1, \
                "only stride=1 / odd kernel supported (see TODO: polyphase)"
            assert p <= _MARGIN
            cin_tot = ci + y_dim
            last = (idx == n_layers - 1)
            cout = co if last else 2 * co          # GLU layer doubles channels
            kw, kb = jax.random.split(keys[idx])
            scale = 1.0 / np.sqrt(cin_tot * k)
            # PyTorch ConvTranspose1d weight layout: (cin_tot, cout, k)
            w = scale * jax.random.normal(kw, (cin_tot, cout, k), jnp.float32)
            b = scale * jax.random.normal(kb, (cout,), jnp.float32)

            # bf16 sublane packing -> 16-aligned row blocks; +1 row reserved
            # for the folded bias constant.
            rpt = _round_up(cin_tot + 1, 16)
            # (cout, k*rpt) MXU weight: tap-major, channel-minor, zero padding
            # columns except the bias column (tap 0, row cin_tot) which holds b.
            w_t = jnp.pad(jnp.transpose(w, (2, 1, 0)),      # (k, cout, cin_tot)
                          ((0, 0), (0, 0), (0, rpt - cin_tot)))
            w_mxu = jnp.transpose(w_t, (1, 0, 2)).reshape(cout, k * rpt)
            w_mxu = w_mxu.at[:, cin_tot].set(b)             # fold bias

            layer = {
                'w': w, 'b': b, 'k': k, 's': s, 'p': p, 'last': last,
                'cin': ci, 'cout': cout, 'rpt': rpt, 'eps': eps,
                'w_mxu': w_mxu.astype(jnp.bfloat16),
            }
            if not last:
                layer['gamma'] = jnp.ones((cout,), jnp.float32)   # GroupNorm
                layer['beta'] = jnp.zeros((cout,), jnp.float32)
                layer['gamma_col'] = layer['gamma'].reshape(cout, 1)
                layer['beta_col'] = layer['beta'].reshape(cout, 1)
            self.layers.append(layer)

    @staticmethod
    def _pick_batch_tile(n, per_sample_bytes, budget=12 << 20):
        """Largest divisor of n that fits the VMEM budget while keeping the
        grid length >= 2 (so both v7x TensorCores get work)."""
        fit = max(1, budget // max(per_sample_bytes, 1))
        for b in range(n, 0, -1):
            if n % b:
                continue
            if b > fit:
                continue
            if n >= 2 and n // b < 2:
                continue
            return b
        return 1

    def __call__(self, x_ncl, y_nc1, batch_tile=None):
        n, cin0, l_seq = x_ncl.shape
        assert cin0 == self.layers[0]['cin']
        assert y_nc1.shape == (n, self.y_dim, 1)

        cout_last = self.layers[-1]['cout']
        max_cin = max(ly['cin'] for ly in self.layers)     # fixed y row band
        max_rows = max_cin + self.y_dim
        max_k = max(ly['k'] * ly['rpt'] for ly in self.layers)

        # ---- batch-tile selection (MXU column fill + per-step amortization)
        per_scratch = (max_k * l_seq + max_rows * (l_seq + 2 * _MARGIN)) * 2
        per_io = 2 * (cin0 * l_seq * 2 + self.y_dim * 2 + cout_last * l_seq * 4)
        per_sample = per_scratch + per_io
        b_tile = batch_tile if batch_tile is not None else \
            self._pick_batch_tile(n, per_sample)
        assert n % b_tile == 0, "batch tile must divide the batch size"
        grid_len = n // b_tile

        cfgs = tuple(
            {'cin': ly['cin'], 'cout': ly['cout'], 'k': ly['k'], 'p': ly['p'],
             'rpt': ly['rpt'], 'last': ly['last'], 'eps': ly['eps']}
            for ly in self.layers)

        # x / y enter as bf16 (halved DMA bytes; the MXU operands are bf16).
        inputs = [x_ncl.astype(jnp.bfloat16), y_nc1.astype(jnp.bfloat16)]
        in_specs = [
            pl.BlockSpec((b_tile, cin0, l_seq), lambda i: (i, 0, 0)),
            pl.BlockSpec((b_tile, self.y_dim, 1), lambda i: (i, 0, 0)),
        ]
        param_bytes = 0
        for ly in self.layers:
            params = [ly['w_mxu']]
            if not ly['last']:
                params += [ly['gamma_col'], ly['beta_col']]
            for prm in params:
                inputs.append(prm)
                in_specs.append(pl.BlockSpec(prm.shape, lambda i: (0, 0)))
                param_bytes += int(np.prod(prm.shape)) * prm.dtype.itemsize

        # ---- VMEM limit sized from the real footprint, capped per chip gen
        scratch_bytes = (max_k * b_tile * l_seq
                         + max_rows * b_tile * (l_seq + 2 * _MARGIN)) * 2
        io_bytes = b_tile * per_io
        needed = scratch_bytes + io_bytes + 2 * param_bytes + (4 << 20)
        try:
            phys = int(getattr(pltpu.get_tpu_info(), "vmem_capacity_bytes",
                               128 << 20))
        except Exception:  # pragma: no cover - emulator / query failure
            phys = 128 << 20
        vmem_limit = min(max(needed, 32 << 20), phys * 3 // 4)
        vmem_limit = max(vmem_limit, needed)

        kernel = functools.partial(
            _decoder_kernel, layers=cfgs, y_dim=self.y_dim, l_seq=l_seq,
            margin=_MARGIN, b_tile=b_tile, y_row0=max_cin)

        return pl.pallas_call(
            kernel,
            out_shape=jax.ShapeDtypeStruct((n, cout_last, l_seq), jnp.float32),
            grid=(grid_len,),
            in_specs=in_specs,
            out_specs=pl.BlockSpec((b_tile, cout_last, l_seq),
                                   lambda i: (i, 0, 0)),
            scratch_shapes=[
                pltpu.VMEM((max_k, b_tile * l_seq), jnp.bfloat16),   # im2col
                pltpu.VMEM((max_rows, b_tile * (l_seq + 2 * _MARGIN)),
                           jnp.bfloat16),                            # acts + y
            ],
            compiler_params=pltpu.CompilerParams(
                dimension_semantics=("parallel",),
                vmem_limit_bytes=int(vmem_limit),
            ),
        )(*inputs)


# ---------------------------------------------------------------------------
# NumPy reference (direct ConvTranspose1d definition) for verification
# ---------------------------------------------------------------------------
def _bf16(a):
    """Round-trip through bf16 (matches the precision the kernel uses)."""
    return np.asarray(
        jnp.asarray(a, jnp.float32).astype(jnp.bfloat16).astype(jnp.float32),
        np.float64)


def _ref_conv_transpose1d(x, w, b, stride, padding):
    n, cin, l = x.shape
    cout, k = w.shape[1], w.shape[2]
    l_out = (l - 1) * stride - 2 * padding + k
    out = np.tile(b[None, :, None], (n, 1, l_out)).astype(np.float64)
    for i in range(l):
        for j in range(k):
            t = i * stride - padding + j
            if 0 <= t < l_out:
                out[:, :, t] += np.einsum('nc,co->no', x[:, :, i], w[:, :, j])
    return out


def _ref_decoder(x, y, layers, eps=1e-5):
    y_rep = np.repeat(y, x.shape[2], axis=2)
    for lyr in layers:
        x = np.concatenate([x, y_rep], axis=1)
        w = _bf16(lyr['w'])
        b = _bf16(lyr['b'])
        h = _ref_conv_transpose1d(x, w, b, lyr['s'], lyr['p'])
        if not lyr['last']:
            gamma = np.asarray(lyr['gamma'], np.float64)[None, :, None]
            beta = np.asarray(lyr['beta'], np.float64)[None, :, None]
            mu = h.mean(axis=(1, 2), keepdims=True)
            var = h.var(axis=(1, 2), keepdims=True)
            hn = (h - mu) / np.sqrt(var + eps) * gamma + beta
            c_half = hn.shape[1] // 2
            h = hn[:, :c_half] * (1.0 / (1.0 + np.exp(-hn[:, c_half:])))
        x = h
    return x


if __name__ == "__main__":
    # One DeConv1d_Layernorm_GLU layer + final plain ConvTranspose1d.
    arch = {'input': [8, 16], 'output': [16, 4], 'kernel': [5, 5],
            'stride': [1, 1]}
    y_dim = 4
    n, l = 4, 128      # L multiple of 128 -> lane-dense stores; grid=(2,)

    key = jax.random.PRNGKey(0)
    kx, ky, kp = jax.random.split(key, 3)
    x = jax.random.normal(kx, (n, arch['input'][0], l), jnp.float32)   # NCL
    y = jax.random.normal(ky, (n, y_dim, 1), jnp.float32)

    decoder = PallasDecoder(arch, y_dim, kp)
    out = jax.block_until_ready(decoder(x, y))
    assert out.shape == (n, arch['output'][-1], l), out.shape

    ref = _ref_decoder(_bf16(x), _bf16(y), decoder.layers)
    # bf16 matmul operands (f32 accumulation) -> looser tolerance than pure f32.
    np.testing.assert_allclose(np.asarray(out, np.float64), ref,
                               rtol=3e-2, atol=3e-2)
    print("KERNEL_OK")
</pallas_src>

<mosaic_0001>
module attributes {stable_mosaic.version = 11 : i64} {
  func.func @_decoder_kernel(%arg0: i32, %arg1: memref<2x8x128xbf16, #tpu.memory_space<vmem>>, %arg2: memref<2x4x1xbf16, #tpu.memory_space<vmem>>, %arg3: memref<32x80xbf16, #tpu.memory_space<vmem>>, %arg4: memref<32x1xf32, #tpu.memory_space<vmem>>, %arg5: memref<32x1xf32, #tpu.memory_space<vmem>>, %arg6: memref<4x160xbf16, #tpu.memory_space<vmem>>, %arg7: memref<2x4x128xf32, #tpu.memory_space<vmem>>, %arg8: memref<160x256xbf16, #tpu.memory_space<vmem>>, %arg9: memref<20x768xbf16, #tpu.memory_space<vmem>>) attributes {dimension_semantics = [#tpu.dimension_semantics<parallel>], iteration_bounds = array<i64: 2>, scalar_prefetch = 0 : i64, scratch_operands = 2 : i64, tpu.core_type = #tpu.core_type<tc>, window_params = [{transform_indices = @transform_0, window_bounds = array<i64: 2, 8, 128>}, {transform_indices = @transform_1, window_bounds = array<i64: 2, 4, 1>}, {pipeline_mode = #tpu.pipeline_mode<synchronous>, transform_indices = @transform_2, window_bounds = array<i64: 32, 80>}, {pipeline_mode = #tpu.pipeline_mode<synchronous>, transform_indices = @transform_3, window_bounds = array<i64: 32, 1>}, {pipeline_mode = #tpu.pipeline_mode<synchronous>, transform_indices = @transform_4, window_bounds = array<i64: 32, 1>}, {pipeline_mode = #tpu.pipeline_mode<synchronous>, transform_indices = @transform_5, window_bounds = array<i64: 4, 160>}, {transform_indices = @transform_6, window_bounds = array<i64: 2, 4, 128>}]} {
    %c0_i32 = arith.constant 0 : i32
    %0 = arith.cmpi eq, %arg0, %c0_i32 : i32
    %1 = arith.extui %0 : i1 to i32
    %c0_i32_0 = arith.constant 0 : i32
    %2 = arith.cmpi ne, %1, %c0_i32_0 : i32
    scf.if %2 {
      %cst_199 = arith.constant 0.000000e+00 : bf16
      %191 = vector.broadcast %cst_199 : bf16 to vector<20x768xbf16>
      %c0_200 = arith.constant 0 : index
      %c0_201 = arith.constant 0 : index
      %192 = vector.load %arg9[%c0_200, %c0_201] : memref<20x768xbf16, #tpu.memory_space<vmem>>, vector<20x768xbf16>
      tpu.vector_store %arg9[%c0_200, %c0_201], %191 {strides = array<i32>} : memref<20x768xbf16, #tpu.memory_space<vmem>>, vector<20x768xbf16>,
      %cst_202 = arith.constant 0.000000e+00 : bf16
      %193 = vector.broadcast %cst_202 : bf16 to vector<160x256xbf16>
      %c0_203 = arith.constant 0 : index
      %c0_204 = arith.constant 0 : index
      %194 = vector.load %arg8[%c0_203, %c0_204] : memref<160x256xbf16, #tpu.memory_space<vmem>>, vector<160x256xbf16>
      tpu.vector_store %arg8[%c0_203, %c0_204], %193 {strides = array<i32>} : memref<160x256xbf16, #tpu.memory_space<vmem>>, vector<160x256xbf16>,
    } else {
    }
    %c0 = arith.constant 0 : index
    %c0_1 = arith.constant 0 : index
    %c0_2 = arith.constant 0 : index
    %3 = vector.load %arg1[%c0, %c0_1, %c0_2] : memref<2x8x128xbf16, #tpu.memory_space<vmem>>, vector<1x8x128xbf16>
    %4 = vector.shape_cast %3 : vector<1x8x128xbf16> to vector<8x128xbf16>
    %c0_3 = arith.constant 0 : index
    %c128 = arith.constant 128 : index
    %5 = vector.load %arg9[%c0_3, %c128] : memref<20x768xbf16, #tpu.memory_space<vmem>>, vector<8x128xbf16>
    tpu.vector_store %arg9[%c0_3, %c128], %4 {strides = array<i32>} : memref<20x768xbf16, #tpu.memory_space<vmem>>, vector<8x128xbf16>,
    %c0_4 = arith.constant 0 : index
    %c0_5 = arith.constant 0 : index
    %c0_6 = arith.constant 0 : index
    %6 = vector.load %arg2[%c0_4, %c0_5, %c0_6] : memref<2x4x1xbf16, #tpu.memory_space<vmem>>, vector<1x4x1xbf16>
    %7 = vector.shape_cast %6 : vector<1x4x1xbf16> to vector<4x1xbf16>
    %8 = vector.shape_cast %7 : vector<4x1xbf16> to vector<4x1xbf16>
    %9 = vector.broadcast %8 : vector<4x1xbf16> to vector<4x128xbf16>
    %c16 = arith.constant 16 : index
    %c128_7 = arith.constant 128 : index
    %10 = vector.load %arg9[%c16, %c128_7] : memref<20x768xbf16, #tpu.memory_space<vmem>>, vector<4x128xbf16>
    tpu.vector_store %arg9[%c16, %c128_7], %9 {strides = array<i32>} : memref<20x768xbf16, #tpu.memory_space<vmem>>, vector<4x128xbf16>,
    %c1 = arith.constant 1 : index
    %c0_8 = arith.constant 0 : index
    %c0_9 = arith.constant 0 : index
    %11 = vector.load %arg1[%c1, %c0_8, %c0_9] : memref<2x8x128xbf16, #tpu.memory_space<vmem>>, vector<1x8x128xbf16>
    %12 = vector.shape_cast %11 : vector<1x8x128xbf16> to vector<8x128xbf16>
    %c0_10 = arith.constant 0 : index
    %c512 = arith.constant 512 : index
    %13 = vector.load %arg9[%c0_10, %c512] : memref<20x768xbf16, #tpu.memory_space<vmem>>, vector<8x128xbf16>
    tpu.vector_store %arg9[%c0_10, %c512], %12 {strides = array<i32>} : memref<20x768xbf16, #tpu.memory_space<vmem>>, vector<8x128xbf16>,
    %c1_11 = arith.constant 1 : index
    %c0_12 = arith.constant 0 : index
    %c0_13 = arith.constant 0 : index
    %14 = vector.load %arg2[%c1_11, %c0_12, %c0_13] : memref<2x4x1xbf16, #tpu.memory_space<vmem>>, vector<1x4x1xbf16>
    %15 = vector.shape_cast %14 : vector<1x4x1xbf16> to vector<4x1xbf16>
    %16 = vector.shape_cast %15 : vector<4x1xbf16> to vector<4x1xbf16>
    %17 = vector.broadcast %16 : vector<4x1xbf16> to vector<4x128xbf16>
    %c16_14 = arith.constant 16 : index
    %c512_15 = arith.constant 512 : index
    %18 = vector.load %arg9[%c16_14, %c512_15] : memref<20x768xbf16, #tpu.memory_space<vmem>>, vector<4x128xbf16>
    tpu.vector_store %arg9[%c16_14, %c512_15], %17 {strides = array<i32>} : memref<20x768xbf16, #tpu.memory_space<vmem>>, vector<4x128xbf16>,
    %cst = arith.constant 1.000000e+00 : bf16
    %19 = vector.broadcast %cst : bf16 to vector<1x256xbf16>
    %c12 = arith.constant 12 : index
    %c0_16 = arith.constant 0 : index
    %20 = vector.load %arg8[%c12, %c0_16] : memref<160x256xbf16, #tpu.memory_space<vmem>>, vector<1x256xbf16>
    tpu.vector_store %arg8[%c12, %c0_16], %19 {strides = array<i32>} : memref<160x256xbf16, #tpu.memory_space<vmem>>, vector<1x256xbf16>,
    %c0_17 = arith.constant 0 : index
    %c130 = arith.constant 130 : index
    %21 = vector.load %arg9[%c0_17, %c130] : memref<20x768xbf16, #tpu.memory_space<vmem>>, vector<8x128xbf16>
    %c0_18 = arith.constant 0 : index
    %c0_19 = arith.constant 0 : index
    %22 = vector.load %arg8[%c0_18, %c0_19] : memref<160x256xbf16, #tpu.memory_space<vmem>>, vector<8x128xbf16>
    tpu.vector_store %arg8[%c0_18, %c0_19], %21 {strides = array<i32>} : memref<160x256xbf16, #tpu.memory_space<vmem>>, vector<8x128xbf16>,
    %c16_20 = arith.constant 16 : index
    %c130_21 = arith.constant 130 : index
    %23 = vector.load %arg9[%c16_20, %c130_21] : memref<20x768xbf16, #tpu.memory_space<vmem>>, vector<4x128xbf16>
    %c8 = arith.constant 8 : index
    %c0_22 = arith.constant 0 : index
    %24 = vector.load %arg8[%c8, %c0_22] : memref<160x256xbf16, #tpu.memory_space<vmem>>, vector<4x128xbf16>
    tpu.vector_store %arg8[%c8, %c0_22], %23 {strides = array<i32>} : memref<160x256xbf16, #tpu.memory_space<vmem>>, vector<4x128xbf16>,
    %c0_23 = arith.constant 0 : index
    %c514 = arith.constant 514 : index
    %25 = vector.load %arg9[%c0_23, %c514] : memref<20x768xbf16, #tpu.memory_space<vmem>>, vector<8x128xbf16>
    %c0_24 = arith.constant 0 : index
    %c128_25 = arith.constant 128 : index
    %26 = vector.load %arg8[%c0_24, %c128_25] : memref<160x256xbf16, #tpu.memory_space<vmem>>, vector<8x128xbf16>
    tpu.vector_store %arg8[%c0_24, %c128_25], %25 {strides = array<i32>} : memref<160x256xbf16, #tpu.memory_space<vmem>>, vector<8x128xbf16>,
    %c16_26 = arith.constant 16 : index
    %c514_27 = arith.constant 514 : index
    %27 = vector.load %arg9[%c16_26, %c514_27] : memref<20x768xbf16, #tpu.memory_space<vmem>>, vector<4x128xbf16>
    %c8_28 = arith.constant 8 : index
    %c128_29 = arith.constant 128 : index
    %28 = vector.load %arg8[%c8_28, %c128_29] : memref<160x256xbf16, #tpu.memory_space<vmem>>, vector<4x128xbf16>
    tpu.vector_store %arg8[%c8_28, %c128_29], %27 {strides = array<i32>} : memref<160x256xbf16, #tpu.memory_space<vmem>>, vector<4x128xbf16>,
    %c0_30 = arith.constant 0 : index
    %c129 = arith.constant 129 : index
    %29 = vector.load %arg9[%c0_30, %c129] : memref<20x768xbf16, #tpu.memory_space<vmem>>, vector<8x128xbf16>
    %c16_31 = arith.constant 16 : index
    %c0_32 = arith.constant 0 : index
    %30 = vector.load %arg8[%c16_31, %c0_32] : memref<160x256xbf16, #tpu.memory_space<vmem>>, vector<8x128xbf16>
    tpu.vector_store %arg8[%c16_31, %c0_32], %29 {strides = array<i32>} : memref<160x256xbf16, #tpu.memory_space<vmem>>, vector<8x128xbf16>,
    %c16_33 = arith.constant 16 : index
    %c129_34 = arith.constant 129 : index
    %31 = vector.load %arg9[%c16_33, %c129_34] : memref<20x768xbf16, #tpu.memory_space<vmem>>, vector<4x128xbf16>
    %c24 = arith.constant 24 : index
    %c0_35 = arith.constant 0 : index
    %32 = vector.load %arg8[%c24, %c0_35] : memref<160x256xbf16, #tpu.memory_space<vmem>>, vector<4x128xbf16>
    tpu.vector_store %arg8[%c24, %c0_35], %31 {strides = array<i32>} : memref<160x256xbf16, #tpu.memory_space<vmem>>, vector<4x128xbf16>,
    %c0_36 = arith.constant 0 : index
    %c513 = arith.constant 513 : index
    %33 = vector.load %arg9[%c0_36, %c513] : memref<20x768xbf16, #tpu.memory_space<vmem>>, vector<8x128xbf16>
    %c16_37 = arith.constant 16 : index
    %c128_38 = arith.constant 128 : index
    %34 = vector.load %arg8[%c16_37, %c128_38] : memref<160x256xbf16, #tpu.memory_space<vmem>>, vector<8x128xbf16>
    tpu.vector_store %arg8[%c16_37, %c128_38], %33 {strides = array<i32>} : memref<160x256xbf16, #tpu.memory_space<vmem>>, vector<8x128xbf16>,
    %c16_39 = arith.constant 16 : index
    %c513_40 = arith.constant 513 : index
    %35 = vector.load %arg9[%c16_39, %c513_40] : memref<20x768xbf16, #tpu.memory_space<vmem>>, vector<4x128xbf16>
    %c24_41 = arith.constant 24 : index
    %c128_42 = arith.constant 128 : index
    %36 = vector.load %arg8[%c24_41, %c128_42] : memref<160x256xbf16, #tpu.memory_space<vmem>>, vector<4x128xbf16>
    tpu.vector_store %arg8[%c24_41, %c128_42], %35 {strides = array<i32>} : memref<160x256xbf16, #tpu.memory_space<vmem>>, vector<4x128xbf16>,
    %c0_43 = arith.constant 0 : index
    %c128_44 = arith.constant 128 : index
    %37 = vector.load %arg9[%c0_43, %c128_44] : memref<20x768xbf16, #tpu.memory_space<vmem>>, vector<8x128xbf16>
    %c32 = arith.constant 32 : index
    %c0_45 = arith.constant 0 : index
    %38 = vector.load %arg8[%c32, %c0_45] : memref<160x256xbf16, #tpu.memory_space<vmem>>, vector<8x128xbf16>
    tpu.vector_store %arg8[%c32, %c0_45], %37 {strides = array<i32>} : memref<160x256xbf16, #tpu.memory_space<vmem>>, vector<8x128xbf16>,
    %c16_46 = arith.constant 16 : index
    %c128_47 = arith.constant 128 : index
    %39 = vector.load %arg9[%c16_46, %c128_47] : memref<20x768xbf16, #tpu.memory_space<vmem>>, vector<4x128xbf16>
    %c40 = arith.constant 40 : index
    %c0_48 = arith.constant 0 : index
    %40 = vector.load %arg8[%c40, %c0_48] : memref<160x256xbf16, #tpu.memory_space<vmem>>, vector<4x128xbf16>
    tpu.vector_store %arg8[%c40, %c0_48], %39 {strides = array<i32>} : memref<160x256xbf16, #tpu.memory_space<vmem>>, vector<4x128xbf16>,
    %c0_49 = arith.constant 0 : index
    %c512_50 = arith.constant 512 : index
    %41 = vector.load %arg9[%c0_49, %c512_50] : memref<20x768xbf16, #tpu.memory_space<vmem>>, vector<8x128xbf16>
    %c32_51 = arith.constant 32 : index
    %c128_52 = arith.constant 128 : index
    %42 = vector.load %arg8[%c32_51, %c128_52] : memref<160x256xbf16, #tpu.memory_space<vmem>>, vector<8x128xbf16>
    tpu.vector_store %arg8[%c32_51, %c128_52], %41 {strides = array<i32>} : memref<160x256xbf16, #tpu.memory_space<vmem>>, vector<8x128xbf16>,
    %c16_53 = arith.constant 16 : index
    %c512_54 = arith.constant 512 : index
    %43 = vector.load %arg9[%c16_53, %c512_54] : memref<20x768xbf16, #tpu.memory_space<vmem>>, vector<4x128xbf16>
    %c40_55 = arith.constant 40 : index
    %c128_56 = arith.constant 128 : index
    %44 = vector.load %arg8[%c40_55, %c128_56] : memref<160x256xbf16, #tpu.memory_space<vmem>>, vector<4x128xbf16>
    tpu.vector_store %arg8[%c40_55, %c128_56], %43 {strides = array<i32>} : memref<160x256xbf16, #tpu.memory_space<vmem>>, vector<4x128xbf16>,
    %c0_57 = arith.constant 0 : index
    %c127 = arith.constant 127 : index
    %45 = vector.load %arg9[%c0_57, %c127] : memref<20x768xbf16, #tpu.memory_space<vmem>>, vector<8x128xbf16>
    %c48 = arith.constant 48 : index
    %c0_58 = arith.constant 0 : index
    %46 = vector.load %arg8[%c48, %c0_58] : memref<160x256xbf16, #tpu.memory_space<vmem>>, vector<8x128xbf16>
    tpu.vector_store %arg8[%c48, %c0_58], %45 {strides = array<i32>} : memref<160x256xbf16, #tpu.memory_space<vmem>>, vector<8x128xbf16>,
    %c16_59 = arith.constant 16 : index
    %c127_60 = arith.constant 127 : index
    %47 = vector.load %arg9[%c16_59, %c127_60] : memref<20x768xbf16, #tpu.memory_space<vmem>>, vector<4x128xbf16>
    %c56 = arith.constant 56 : index
    %c0_61 = arith.constant 0 : index
    %48 = vector.load %arg8[%c56, %c0_61] : memref<160x256xbf16, #tpu.memory_space<vmem>>, vector<4x128xbf16>
    tpu.vector_store %arg8[%c56, %c0_61], %47 {strides = array<i32>} : memref<160x256xbf16, #tpu.memory_space<vmem>>, vector<4x128xbf16>,
    %c0_62 = arith.constant 0 : index
    %c511 = arith.constant 511 : index
    %49 = vector.load %arg9[%c0_62, %c511] : memref<20x768xbf16, #tpu.memory_space<vmem>>, vector<8x128xbf16>
    %c48_63 = arith.constant 48 : index
    %c128_64 = arith.constant 128 : index
    %50 = vector.load %arg8[%c48_63, %c128_64] : memref<160x256xbf16, #tpu.memory_space<vmem>>, vector<8x128xbf16>
    tpu.vector_store %arg8[%c48_63, %c128_64], %49 {strides = array<i32>} : memref<160x256xbf16, #tpu.memory_space<vmem>>, vector<8x128xbf16>,
    %c16_65 = arith.constant 16 : index
    %c511_66 = arith.constant 511 : index
    %51 = vector.load %arg9[%c16_65, %c511_66] : memref<20x768xbf16, #tpu.memory_space<vmem>>, vector<4x128xbf16>
    %c56_67 = arith.constant 56 : index
    %c128_68 = arith.constant 128 : index
    %52 = vector.load %arg8[%c56_67, %c128_68] : memref<160x256xbf16, #tpu.memory_space<vmem>>, vector<4x128xbf16>
    tpu.vector_store %arg8[%c56_67, %c128_68], %51 {strides = array<i32>} : memref<160x256xbf16, #tpu.memory_space<vmem>>, vector<4x128xbf16>,
    %c0_69 = arith.constant 0 : index
    %c126 = arith.constant 126 : index
    %53 = vector.load %arg9[%c0_69, %c126] : memref<20x768xbf16, #tpu.memory_space<vmem>>, vector<8x128xbf16>
    %c64 = arith.constant 64 : index
    %c0_70 = arith.constant 0 : index
    %54 = vector.load %arg8[%c64, %c0_70] : memref<160x256xbf16, #tpu.memory_space<vmem>>, vector<8x128xbf16>
    tpu.vector_store %arg8[%c64, %c0_70], %53 {strides = array<i32>} : memref<160x256xbf16, #tpu.memory_space<vmem>>, vector<8x128xbf16>,
    %c16_71 = arith.constant 16 : index
    %c126_72 = arith.constant 126 : index
    %55 = vector.load %arg9[%c16_71, %c126_72] : memref<20x768xbf16, #tpu.memory_space<vmem>>, vector<4x128xbf16>
    %c72 = arith.constant 72 : index
    %c0_73 = arith.constant 0 : index
    %56 = vector.load %arg8[%c72, %c0_73] : memref<160x256xbf16, #tpu.memory_space<vmem>>, vector<4x128xbf16>
    tpu.vector_store %arg8[%c72, %c0_73], %55 {strides = array<i32>} : memref<160x256xbf16, #tpu.memory_space<vmem>>, vector<4x128xbf16>,
    %c0_74 = arith.constant 0 : index
    %c510 = arith.constant 510 : index
    %57 = vector.load %arg9[%c0_74, %c510] : memref<20x768xbf16, #tpu.memory_space<vmem>>, vector<8x128xbf16>
    %c64_75 = arith.constant 64 : index
    %c128_76 = arith.constant 128 : index
    %58 = vector.load %arg8[%c64_75, %c128_76] : memref<160x256xbf16, #tpu.memory_space<vmem>>, vector<8x128xbf16>
    tpu.vector_store %arg8[%c64_75, %c128_76], %57 {strides = array<i32>} : memref<160x256xbf16, #tpu.memory_space<vmem>>, vector<8x128xbf16>,
    %c16_77 = arith.constant 16 : index
    %c510_78 = arith.constant 510 : index
    %59 = vector.load %arg9[%c16_77, %c510_78] : memref<20x768xbf16, #tpu.memory_space<vmem>>, vector<4x128xbf16>
    %c72_79 = arith.constant 72 : index
    %c128_80 = arith.constant 128 : index
    %60 = vector.load %arg8[%c72_79, %c128_80] : memref<160x256xbf16, #tpu.memory_space<vmem>>, vector<4x128xbf16>
    tpu.vector_store %arg8[%c72_79, %c128_80], %59 {strides = array<i32>} : memref<160x256xbf16, #tpu.memory_space<vmem>>, vector<4x128xbf16>,
    %c0_81 = arith.constant 0 : index
    %c0_82 = arith.constant 0 : index
    %61 = vector.load %arg3[%c0_81, %c0_82] : memref<32x80xbf16, #tpu.memory_space<vmem>>, vector<32x80xbf16>
    %c0_83 = arith.constant 0 : index
    %c0_84 = arith.constant 0 : index
    %62 = vector.load %arg8[%c0_83, %c0_84] : memref<160x256xbf16, #tpu.memory_space<vmem>>, vector<80x256xbf16>
    %cst_85 = arith.constant dense<0.000000e+00> : vector<32x256xf32>
    %63 = tpu.matmul %61, %62, %cst_85 {dimension_numbers = #tpu.dot_dimension_numbers<[1], [0], [0], [1], [0, 0, 1, 1], [], []>} : vector<32x80xbf16>, vector<80x256xbf16>, vector<32x256xf32> -> vector<32x256xf32>
    %64 = vector.extract_strided_slice %63 {offsets = [0, 0], sizes = [32, 128], strides = [1, 1]} : vector<32x256xf32> to vector<32x128xf32>
    %65 = vector.shape_cast %64 : vector<32x128xf32> to vector<1x32x128xf32>
    %cst_86 = arith.constant dense<0.000000e+00> : vector<1xf32>
    %66 = vector.multi_reduction <add>, %65, %cst_86 [1, 2] : vector<1x32x128xf32> to vector<1xf32>
    %67 = vector.shape_cast %66 : vector<1xf32> to vector<1x1x1xf32>
    %68 = vector.extract %67[0, 0, 0] : f32 from vector<1x1x1xf32>
    %cst_87 = arith.constant 4.096000e+03 : f32
    %69 = arith.divf %68, %cst_87 : f32
    %70 = arith.mulf %64, %64 : vector<32x128xf32>
    %71 = vector.shape_cast %70 : vector<32x128xf32> to vector<1x32x128xf32>
    %cst_88 = arith.constant dense<0.000000e+00> : vector<1xf32>
    %72 = vector.multi_reduction <add>, %71, %cst_88 [1, 2] : vector<1x32x128xf32> to vector<1xf32>
    %73 = vector.shape_cast %72 : vector<1xf32> to vector<1x1x1xf32>
    %74 = vector.extract %73[0, 0, 0] : f32 from vector<1x1x1xf32>
    %cst_89 = arith.constant 4.096000e+03 : f32
    %75 = arith.divf %74, %cst_89 : f32
    %76 = arith.mulf %69, %69 : f32
    %77 = arith.subf %75, %76 : f32
    %cst_90 = arith.constant 9.99999974E-6 : f32
    %78 = arith.addf %77, %cst_90 : f32
    %79 = math.rsqrt %78 : f32
    %c0_91 = arith.constant 0 : index
    %c0_92 = arith.constant 0 : index
    %80 = vector.load %arg4[%c0_91, %c0_92] : memref<32x1xf32, #tpu.memory_space<vmem>>, vector<32x1xf32>
    %81 = vector.broadcast %79 : f32 to vector<32x1xf32>
    %82 = arith.mulf %80, %81 : vector<32x1xf32>
    %c0_93 = arith.constant 0 : index
    %c0_94 = arith.constant 0 : index
    %83 = vector.load %arg5[%c0_93, %c0_94] : memref<32x1xf32, #tpu.memory_space<vmem>>, vector<32x1xf32>
    %84 = vector.broadcast %69 : f32 to vector<32x1xf32>
    %85 = arith.mulf %84, %82 : vector<32x1xf32>
    %86 = arith.subf %83, %85 : vector<32x1xf32>
    %87 = vector.broadcast %82 : vector<32x1xf32> to vector<32x128xf32>
    %88 = arith.mulf %64, %87 : vector<32x128xf32>
    %89 = vector.broadcast %86 : vector<32x1xf32> to vector<32x128xf32>
    %90 = arith.addf %88, %89 : vector<32x128xf32>
    %91 = vector.extract_strided_slice %90 {offsets = [0, 0], sizes = [16, 128], strides = [1, 1]} : vector<32x128xf32> to vector<16x128xf32>
    %92 = vector.extract_strided_slice %90 {offsets = [16, 0], sizes = [16, 128], strides = [1, 1]} : vector<32x128xf32> to vector<16x128xf32>
    %93 = arith.negf %92 : vector<16x128xf32>
    %94 = math.exp %93 : vector<16x128xf32>
    %cst_95 = arith.constant 1.000000e+00 : f32
    %95 = vector.broadcast %cst_95 : f32 to vector<16x128xf32>
    %96 = arith.addf %95, %94 : vector<16x128xf32>
    %97 = arith.divf %95, %96 : vector<16x128xf32>
    %98 = arith.mulf %91, %97 : vector<16x128xf32>
    %99 = arith.truncf %98 : vector<16x128xf32> to vector<16x128xbf16>
    %c0_96 = arith.constant 0 : index
    %c128_97 = arith.constant 128 : index
    %100 = vector.load %arg9[%c0_96, %c128_97] : memref<20x768xbf16, #tpu.memory_space<vmem>>, vector<16x128xbf16>
    tpu.vector_store %arg9[%c0_96, %c128_97], %99 {strides = array<i32>} : memref<20x768xbf16, #tpu.memory_space<vmem>>, vector<16x128xbf16>,
    %101 = vector.extract_strided_slice %63 {offsets = [0, 128], sizes = [32, 128], strides = [1, 1]} : vector<32x256xf32> to vector<32x128xf32>
    %102 = vector.shape_cast %101 : vector<32x128xf32> to vector<1x32x128xf32>
    %cst_98 = arith.constant dense<0.000000e+00> : vector<1xf32>
    %103 = vector.multi_reduction <add>, %102, %cst_98 [1, 2] : vector<1x32x128xf32> to vector<1xf32>
    %104 = vector.shape_cast %103 : vector<1xf32> to vector<1x1x1xf32>
    %105 = vector.extract %104[0, 0, 0] : f32 from vector<1x1x1xf32>
    %cst_99 = arith.constant 4.096000e+03 : f32
    %106 = arith.divf %105, %cst_99 : f32
    %107 = arith.mulf %101, %101 : vector<32x128xf32>
    %108 = vector.shape_cast %107 : vector<32x128xf32> to vector<1x32x128xf32>
    %cst_100 = arith.constant dense<0.000000e+00> : vector<1xf32>
    %109 = vector.multi_reduction <add>, %108, %cst_100 [1, 2] : vector<1x32x128xf32> to vector<1xf32>
    %110 = vector.shape_cast %109 : vector<1xf32> to vector<1x1x1xf32>
    %111 = vector.extract %110[0, 0, 0] : f32 from vector<1x1x1xf32>
    %cst_101 = arith.constant 4.096000e+03 : f32
    %112 = arith.divf %111, %cst_101 : f32
    %113 = arith.mulf %106, %106 : f32
    %114 = arith.subf %112, %113 : f32
    %cst_102 = arith.constant 9.99999974E-6 : f32
    %115 = arith.addf %114, %cst_102 : f32
    %116 = math.rsqrt %115 : f32
    %c0_103 = arith.constant 0 : index
    %c0_104 = arith.constant 0 : index
    %117 = vector.load %arg4[%c0_103, %c0_104] : memref<32x1xf32, #tpu.memory_space<vmem>>, vector<32x1xf32>
    %118 = vector.broadcast %116 : f32 to vector<32x1xf32>
    %119 = arith.mulf %117, %118 : vector<32x1xf32>
    %c0_105 = arith.constant 0 : index
    %c0_106 = arith.constant 0 : index
    %120 = vector.load %arg5[%c0_105, %c0_106] : memref<32x1xf32, #tpu.memory_space<vmem>>, vector<32x1xf32>
    %121 = vector.broadcast %106 : f32 to vector<32x1xf32>
    %122 = arith.mulf %121, %119 : vector<32x1xf32>
    %123 = arith.subf %120, %122 : vector<32x1xf32>
    %124 = vector.broadcast %119 : vector<32x1xf32> to vector<32x128xf32>
    %125 = arith.mulf %101, %124 : vector<32x128xf32>
    %126 = vector.broadcast %123 : vector<32x1xf32> to vector<32x128xf32>
    %127 = arith.addf %125, %126 : vector<32x128xf32>
    %128 = vector.extract_strided_slice %127 {offsets = [0, 0], sizes = [16, 128], strides = [1, 1]} : vector<32x128xf32> to vector<16x128xf32>
    %129 = vector.extract_strided_slice %127 {offsets = [16, 0], sizes = [16, 128], strides = [1, 1]} : vector<32x128xf32> to vector<16x128xf32>
    %130 = arith.negf %129 : vector<16x128xf32>
    %131 = math.exp %130 : vector<16x128xf32>
    %cst_107 = arith.constant 1.000000e+00 : f32
    %132 = vector.broadcast %cst_107 : f32 to vector<16x128xf32>
    %133 = arith.addf %132, %131 : vector<16x128xf32>
    %134 = arith.divf %132, %133 : vector<16x128xf32>
    %135 = arith.mulf %128, %134 : vector<16x128xf32>
    %136 = arith.truncf %135 : vector<16x128xf32> to vector<16x128xbf16>
    %c0_108 = arith.constant 0 : index
    %c512_109 = arith.constant 512 : index
    %137 = vector.load %arg9[%c0_108, %c512_109] : memref<20x768xbf16, #tpu.memory_space<vmem>>, vector<16x128xbf16>
    tpu.vector_store %arg9[%c0_108, %c512_109], %136 {strides = array<i32>} : memref<20x768xbf16, #tpu.memory_space<vmem>>, vector<16x128xbf16>,
    %cst_110 = arith.constant 1.000000e+00 : bf16
    %138 = vector.broadcast %cst_110 : bf16 to vector<1x256xbf16>
    %c20 = arith.constant 20 : index
    %c0_111 = arith.constant 0 : index
    %139 = vector.load %arg8[%c20, %c0_111] : memref<160x256xbf16, #tpu.memory_space<vmem>>, vector<1x256xbf16>
    tpu.vector_store %arg8[%c20, %c0_111], %138 {strides = array<i32>} : memref<160x256xbf16, #tpu.memory_space<vmem>>, vector<1x256xbf16>,
    %c0_112 = arith.constant 0 : index
    %c130_113 = arith.constant 130 : index
    %140 = vector.load %arg9[%c0_112, %c130_113] : memref<20x768xbf16, #tpu.memory_space<vmem>>, vector<16x128xbf16>
    %c0_114 = arith.constant 0 : index
    %c0_115 = arith.constant 0 : index
    %141 = vector.load %arg8[%c0_114, %c0_115] : memref<160x256xbf16, #tpu.memory_space<vmem>>, vector<16x128xbf16>
    tpu.vector_store %arg8[%c0_114, %c0_115], %140 {strides = array<i32>} : memref<160x256xbf16, #tpu.memory_space<vmem>>, vector<16x128xbf16>,
    %c16_116 = arith.constant 16 : index
    %c130_117 = arith.constant 130 : index
    %142 = vector.load %arg9[%c16_116, %c130_117] : memref<20x768xbf16, #tpu.memory_space<vmem>>, vector<4x128xbf16>
    %c16_118 = arith.constant 16 : index
    %c0_119 = arith.constant 0 : index
    %143 = vector.load %arg8[%c16_118, %c0_119] : memref<160x256xbf16, #tpu.memory_space<vmem>>, vector<4x128xbf16>
    tpu.vector_store %arg8[%c16_118, %c0_119], %142 {strides = array<i32>} : memref<160x256xbf16, #tpu.memory_space<vmem>>, vector<4x128xbf16>,
    %c0_120 = arith.constant 0 : index
    %c514_121 = arith.constant 514 : index
    %144 = vector.load %arg9[%c0_120, %c514_121] : memref<20x768xbf16, #tpu.memory_space<vmem>>, vector<16x128xbf16>
    %c0_122 = arith.constant 0 : index
    %c128_123 = arith.constant 128 : index
    %145 = vector.load %arg8[%c0_122, %c128_123] : memref<160x256xbf16, #tpu.memory_space<vmem>>, vector<16x128xbf16>
    tpu.vector_store %arg8[%c0_122, %c128_123], %144 {strides = array<i32>} : memref<160x256xbf16, #tpu.memory_space<vmem>>, vector<16x128xbf16>,
    %c16_124 = arith.constant 16 : index
    %c514_125 = arith.constant 514 : index
    %146 = vector.load %arg9[%c16_124, %c514_125] : memref<20x768xbf16, #tpu.memory_space<vmem>>, vector<4x128xbf16>
    %c16_126 = arith.constant 16 : index
    %c128_127 = arith.constant 128 : index
    %147 = vector.load %arg8[%c16_126, %c128_127] : memref<160x256xbf16, #tpu.memory_space<vmem>>, vector<4x128xbf16>
    tpu.vector_store %arg8[%c16_126, %c128_127], %146 {strides = array<i32>} : memref<160x256xbf16, #tpu.memory_space<vmem>>, vector<4x128xbf16>,
    %c0_128 = arith.constant 0 : index
    %c129_129 = arith.constant 129 : index
    %148 = vector.load %arg9[%c0_128, %c129_129] : memref<20x768xbf16, #tpu.memory_space<vmem>>, vector<16x128xbf16>
    %c32_130 = arith.constant 32 : index
    %c0_131 = arith.constant 0 : index
    %149 = vector.load %arg8[%c32_130, %c0_131] : memref<160x256xbf16, #tpu.memory_space<vmem>>, vector<16x128xbf16>
    tpu.vector_store %arg8[%c32_130, %c0_131], %148 {strides = array<i32>} : memref<160x256xbf16, #tpu.memory_space<vmem>>, vector<16x128xbf16>,
    %c16_132 = arith.constant 16 : index
    %c129_133 = arith.constant 129 : index
    %150 = vector.load %arg9[%c16_132, %c129_133] : memref<20x768xbf16, #tpu.memory_space<vmem>>, vector<4x128xbf16>
    %c48_134 = arith.constant 48 : index
    %c0_135 = arith.constant 0 : index
    %151 = vector.load %arg8[%c48_134, %c0_135] : memref<160x256xbf16, #tpu.memory_space<vmem>>, vector<4x128xbf16>
    tpu.vector_store %arg8[%c48_134, %c0_135], %150 {strides = array<i32>} : memref<160x256xbf16, #tpu.memory_space<vmem>>, vector<4x128xbf16>,
    %c0_136 = arith.constant 0 : index
    %c513_137 = arith.constant 513 : index
    %152 = vector.load %arg9[%c0_136, %c513_137] : memref<20x768xbf16, #tpu.memory_space<vmem>>, vector<16x128xbf16>
    %c32_138 = arith.constant 32 : index
    %c128_139 = arith.constant 128 : index
    %153 = vector.load %arg8[%c32_138, %c128_139] : memref<160x256xbf16, #tpu.memory_space<vmem>>, vector<16x128xbf16>
    tpu.vector_store %arg8[%c32_138, %c128_139], %152 {strides = array<i32>} : memref<160x256xbf16, #tpu.memory_space<vmem>>, vector<16x128xbf16>,
    %c16_140 = arith.constant 16 : index
    %c513_141 = arith.constant 513 : index
    %154 = vector.load %arg9[%c16_140, %c513_141] : memref<20x768xbf16, #tpu.memory_space<vmem>>, vector<4x128xbf16>
    %c48_142 = arith.constant 48 : index
    %c128_143 = arith.constant 128 : index
    %155 = vector.load %arg8[%c48_142, %c128_143] : memref<160x256xbf16, #tpu.memory_space<vmem>>, vector<4x128xbf16>
    tpu.vector_store %arg8[%c48_142, %c128_143], %154 {strides = array<i32>} : memref<160x256xbf16, #tpu.memory_space<vmem>>, vector<4x128xbf16>,
    %c0_144 = arith.constant 0 : index
    %c128_145 = arith.constant 128 : index
    %156 = vector.load %arg9[%c0_144, %c128_145] : memref<20x768xbf16, #tpu.memory_space<vmem>>, vector<16x128xbf16>
    %c64_146 = arith.constant 64 : index
    %c0_147 = arith.constant 0 : index
    %157 = vector.load %arg8[%c64_146, %c0_147] : memref<160x256xbf16, #tpu.memory_space<vmem>>, vector<16x128xbf16>
    tpu.vector_store %arg8[%c64_146, %c0_147], %156 {strides = array<i32>} : memref<160x256xbf16, #tpu.memory_space<vmem>>, vector<16x128xbf16>,
    %c16_148 = arith.constant 16 : index
    %c128_149 = arith.constant 128 : index
    %158 = vector.load %arg9[%c16_148, %c128_149] : memref<20x768xbf16, #tpu.memory_space<vmem>>, vector<4x128xbf16>
    %c80 = arith.constant 80 : index
    %c0_150 = arith.constant 0 : index
    %159 = vector.load %arg8[%c80, %c0_150] : memref<160x256xbf16, #tpu.memory_space<vmem>>, vector<4x128xbf16>
    tpu.vector_store %arg8[%c80, %c0_150], %158 {strides = array<i32>} : memref<160x256xbf16, #tpu.memory_space<vmem>>, vector<4x128xbf16>,
    %c0_151 = arith.constant 0 : index
    %c512_152 = arith.constant 512 : index
    %160 = vector.load %arg9[%c0_151, %c512_152] : memref<20x768xbf16, #tpu.memory_space<vmem>>, vector<16x128xbf16>
    %c64_153 = arith.constant 64 : index
    %c128_154 = arith.constant 128 : index
    %161 = vector.load %arg8[%c64_153, %c128_154] : memref<160x256xbf16, #tpu.memory_space<vmem>>, vector<16x128xbf16>
    tpu.vector_store %arg8[%c64_153, %c128_154], %160 {strides = array<i32>} : memref<160x256xbf16, #tpu.memory_space<vmem>>, vector<16x128xbf16>,
    %c16_155 = arith.constant 16 : index
    %c512_156 = arith.constant 512 : index
    %162 = vector.load %arg9[%c16_155, %c512_156] : memref<20x768xbf16, #tpu.memory_space<vmem>>, vector<4x128xbf16>
    %c80_157 = arith.constant 80 : index
    %c128_158 = arith.constant 128 : index
    %163 = vector.load %arg8[%c80_157, %c128_158] : memref<160x256xbf16, #tpu.memory_space<vmem>>, vector<4x128xbf16>
    tpu.vector_store %arg8[%c80_157, %c128_158], %162 {strides = array<i32>} : memref<160x256xbf16, #tpu.memory_space<vmem>>, vector<4x128xbf16>,
    %c0_159 = arith.constant 0 : index
    %c127_160 = arith.constant 127 : index
    %164 = vector.load %arg9[%c0_159, %c127_160] : memref<20x768xbf16, #tpu.memory_space<vmem>>, vector<16x128xbf16>
    %c96 = arith.constant 96 : index
    %c0_161 = arith.constant 0 : index
    %165 = vector.load %arg8[%c96, %c0_161] : memref<160x256xbf16, #tpu.memory_space<vmem>>, vector<16x128xbf16>
    tpu.vector_store %arg8[%c96, %c0_161], %164 {strides = array<i32>} : memref<160x256xbf16, #tpu.memory_space<vmem>>, vector<16x128xbf16>,
    %c16_162 = arith.constant 16 : index
    %c127_163 = arith.constant 127 : index
    %166 = vector.load %arg9[%c16_162, %c127_163] : memref<20x768xbf16, #tpu.memory_space<vmem>>, vector<4x128xbf16>
    %c112 = arith.constant 112 : index
    %c0_164 = arith.constant 0 : index
    %167 = vector.load %arg8[%c112, %c0_164] : memref<160x256xbf16, #tpu.memory_space<vmem>>, vector<4x128xbf16>
    tpu.vector_store %arg8[%c112, %c0_164], %166 {strides = array<i32>} : memref<160x256xbf16, #tpu.memory_space<vmem>>, vector<4x128xbf16>,
    %c0_165 = arith.constant 0 : index
    %c511_166 = arith.constant 511 : index
    %168 = vector.load %arg9[%c0_165, %c511_166] : memref<20x768xbf16, #tpu.memory_space<vmem>>, vector<16x128xbf16>
    %c96_167 = arith.constant 96 : index
    %c128_168 = arith.constant 128 : index
    %169 = vector.load %arg8[%c96_167, %c128_168] : memref<160x256xbf16, #tpu.memory_space<vmem>>, vector<16x128xbf16>
    tpu.vector_store %arg8[%c96_167, %c128_168], %168 {strides = array<i32>} : memref<160x256xbf16, #tpu.memory_space<vmem>>, vector<16x128xbf16>,
    %c16_169 = arith.constant 16 : index
    %c511_170 = arith.constant 511 : index
    %170 = vector.load %arg9[%c16_169, %c511_170] : memref<20x768xbf16, #tpu.memory_space<vmem>>, vector<4x128xbf16>
    %c112_171 = arith.constant 112 : index
    %c128_172 = arith.constant 128 : index
    %171 = vector.load %arg8[%c112_171, %c128_172] : memref<160x256xbf16, #tpu.memory_space<vmem>>, vector<4x128xbf16>
    tpu.vector_store %arg8[%c112_171, %c128_172], %170 {strides = array<i32>} : memref<160x256xbf16, #tpu.memory_space<vmem>>, vector<4x128xbf16>,
    %c0_173 = arith.constant 0 : index
    %c126_174 = arith.constant 126 : index
    %172 = vector.load %arg9[%c0_173, %c126_174] : memref<20x768xbf16, #tpu.memory_space<vmem>>, vector<16x128xbf16>
    %c128_175 = arith.constant 128 : index
    %c0_176 = arith.constant 0 : index
    %173 = vector.load %arg8[%c128_175, %c0_176] : memref<160x256xbf16, #tpu.memory_space<vmem>>, vector<16x128xbf16>
    tpu.vector_store %arg8[%c128_175, %c0_176], %172 {strides = array<i32>} : memref<160x256xbf16, #tpu.memory_space<vmem>>, vector<16x128xbf16>,
    %c16_177 = arith.constant 16 : index
    %c126_178 = arith.constant 126 : index
    %174 = vector.load %arg9[%c16_177, %c126_178] : memref<20x768xbf16, #tpu.memory_space<vmem>>, vector<4x128xbf16>
    %c144 = arith.constant 144 : index
    %c0_179 = arith.constant 0 : index
    %175 = vector.load %arg8[%c144, %c0_179] : memref<160x256xbf16, #tpu.memory_space<vmem>>, vector<4x128xbf16>
    tpu.vector_store %arg8[%c144, %c0_179], %174 {strides = array<i32>} : memref<160x256xbf16, #tpu.memory_space<vmem>>, vector<4x128xbf16>,
    %c0_180 = arith.constant 0 : index
    %c510_181 = arith.constant 510 : index
    %176 = vector.load %arg9[%c0_180, %c510_181] : memref<20x768xbf16, #tpu.memory_space<vmem>>, vector<16x128xbf16>
    %c128_182 = arith.constant 128 : index
    %c128_183 = arith.constant 128 : index
    %177 = vector.load %arg8[%c128_182, %c128_183] : memref<160x256xbf16, #tpu.memory_space<vmem>>, vector<16x128xbf16>
    tpu.vector_store %arg8[%c128_182, %c128_183], %176 {strides = array<i32>} : memref<160x256xbf16, #tpu.memory_space<vmem>>, vector<16x128xbf16>,
    %c16_184 = arith.constant 16 : index
    %c510_185 = arith.constant 510 : index
    %178 = vector.load %arg9[%c16_184, %c510_185] : memref<20x768xbf16, #tpu.memory_space<vmem>>, vector<4x128xbf16>
    %c144_186 = arith.constant 144 : index
    %c128_187 = arith.constant 128 : index
    %179 = vector.load %arg8[%c144_186, %c128_187] : memref<160x256xbf16, #tpu.memory_space<vmem>>, vector<4x128xbf16>
    tpu.vector_store %arg8[%c144_186, %c128_187], %178 {strides = array<i32>} : memref<160x256xbf16, #tpu.memory_space<vmem>>, vector<4x128xbf16>,
    %c0_188 = arith.constant 0 : index
    %c0_189 = arith.constant 0 : index
    %180 = vector.load %arg6[%c0_188, %c0_189] : memref<4x160xbf16, #tpu.memory_space<vmem>>, vector<4x160xbf16>
    %c0_190 = arith.constant 0 : index
    %c0_191 = arith.constant 0 : index
    %181 = vector.load %arg8[%c0_190, %c0_191] : memref<160x256xbf16, #tpu.memory_space<vmem>>, vector<160x256xbf16>
    %cst_192 = arith.constant dense<0.000000e+00> : vector<4x256xf32>
    %182 = tpu.matmul %180, %181, %cst_192 {dimension_numbers = #tpu.dot_dimension_numbers<[1], [0], [0], [1], [0, 0, 1, 1], [], []>} : vector<4x160xbf16>, vector<160x256xbf16>, vector<4x256xf32> -> vector<4x256xf32>
    %183 = vector.extract_strided_slice %182 {offsets = [0, 0], sizes = [4, 128], strides = [1, 1]} : vector<4x256xf32> to vector<4x128xf32>
    %c0_193 = arith.constant 0 : index
    %c0_194 = arith.constant 0 : index
    %c0_195 = arith.constant 0 : index
    %184 = vector.load %arg7[%c0_193, %c0_194, %c0_195] : memref<2x4x128xf32, #tpu.memory_space<vmem>>, vector<1x4x128xf32>
    %185 = vector.shape_cast %184 : vector<1x4x128xf32> to vector<4x128xf32>
    %186 = vector.shape_cast %183 : vector<4x128xf32> to vector<1x4x128xf32>
    tpu.vector_store %arg7[%c0_193, %c0_194, %c0_195], %186 {strides = array<i32>} : memref<2x4x128xf32, #tpu.memory_space<vmem>>, vector<1x4x128xf32>,
    %187 = vector.extract_strided_slice %182 {offsets = [0, 128], sizes = [4, 128], strides = [1, 1]} : vector<4x256xf32> to vector<4x128xf32>
    %c1_196 = arith.constant 1 : index
    %c0_197 = arith.constant 0 : index
    %c0_198 = arith.constant 0 : index
    %188 = vector.load %arg7[%c1_196, %c0_197, %c0_198] : memref<2x4x128xf32, #tpu.memory_space<vmem>>, vector<1x4x128xf32>
    %189 = vector.shape_cast %188 : vector<1x4x128xf32> to vector<4x128xf32>
    %190 = vector.shape_cast %187 : vector<4x128xf32> to vector<1x4x128xf32>
    tpu.vector_store %arg7[%c1_196, %c0_197, %c0_198], %190 {strides = array<i32>} : memref<2x4x128xf32, #tpu.memory_space<vmem>>, vector<1x4x128xf32>,
    return
  }
  func.func @transform_0(%arg0: i32) -> (i32, i32, i32) {
    %c0_i32 = arith.constant 0 : i32
    %c0_i32_0 = arith.constant 0 : i32
    %c0_i32_1 = arith.constant 0 : i32
    return %arg0, %c0_i32, %c0_i32_0 : i32, i32, i32
  }
  func.func @transform_1(%arg0: i32) -> (i32, i32, i32) {
    %c0_i32 = arith.constant 0 : i32
    %c0_i32_0 = arith.constant 0 : i32
    %c0_i32_1 = arith.constant 0 : i32
    return %arg0, %c0_i32, %c0_i32_0 : i32, i32, i32
  }
  func.func @transform_2(%arg0: i32) -> (i32, i32) {
    %c0_i32 = arith.constant 0 : i32
    %c0_i32_0 = arith.constant 0 : i32
    %c0_i32_1 = arith.constant 0 : i32
    return %c0_i32, %c0_i32_0 : i32, i32
  }
  func.func @transform_3(%arg0: i32) -> (i32, i32) {
    %c0_i32 = arith.constant 0 : i32
    %c0_i32_0 = arith.constant 0 : i32
    %c0_i32_1 = arith.constant 0 : i32
    return %c0_i32, %c0_i32_0 : i32, i32
  }
  func.func @transform_4(%arg0: i32) -> (i32, i32) {
    %c0_i32 = arith.constant 0 : i32
    %c0_i32_0 = arith.constant 0 : i32
    %c0_i32_1 = arith.constant 0 : i32
    return %c0_i32, %c0_i32_0 : i32, i32
  }
  func.func @transform_5(%arg0: i32) -> (i32, i32) {
    %c0_i32 = arith.constant 0 : i32
    %c0_i32_0 = arith.constant 0 : i32
    %c0_i32_1 = arith.constant 0 : i32
    return %c0_i32, %c0_i32_0 : i32, i32
  }
  func.func @transform_6(%arg0: i32) -> (i32, i32, i32) {
    %c0_i32 = arith.constant 0 : i32
    %c0_i32_0 = arith.constant 0 : i32
    %c0_i32_1 = arith.constant 0 : i32
    return %arg0, %c0_i32, %c0_i32_0 : i32, i32, i32
  }
}

</mosaic_0001>

<llo_original>
// kernel: tpu_custom_call.1
$region0: #{tpu_custom_call.1}
  #allocation0 [shape = 'u32[]', space=smem, size = 0x4, offset = 0x4, fixed_abs, tag = 'smem constant byte address 0x4 - core index']
  #allocation1 [shape = 'u32[72,128]{1,0:T(1,128)}', space=vmem, size = 0x9000, scoped, tag = 'internal scratch']
  #allocation2 [shape = 'bf16[160,256]{1,0:T(8,128)(2,1)}', space=vmem, size = 0x14000, scoped, tag = 'scratch operand']
  #allocation3 [shape = 'bf16[20,768]{1,0:T(8,128)(2,1)}', space=vmem, size = 0x9000, scoped, tag = 'scratch operand']
  %s0 = inlined_call_operand.vmem [shape: bf16[4,8,128], index: 0, kind: input, shape index: {}]
  %s1 = inlined_call_operand.vmem [shape: bf16[4,4,1], index: 1, kind: input, shape index: {}]
  %s2 = inlined_call_operand.vmem [shape: bf16[32,80], index: 2, kind: input, shape index: {}]
  %s3 = inlined_call_operand.vmem [shape: f32[32,1], index: 3, kind: input, shape index: {}]
  %s4 = inlined_call_operand.vmem [shape: f32[32,1], index: 4, kind: input, shape index: {}]
  %s5 = inlined_call_operand.vmem [shape: bf16[4,160], index: 5, kind: input, shape index: {}]
  %s6 = inlined_call_operand.hbm [shape: f32[4,4,128], index: 6, kind: output, shape index: {}]
  %s7 = sld [smem:[#allocation0]]
  $region61: #{tpu_custom_call.1} parent=0
    _
  %s9 = ssub.s32 1, %s7
  %s10 = scalar_select 0, %s9, %s7
  $region1: #{tpu_custom_call.1} parent=0
    #allocation4 [shape = 'u8[8192]{0}', space=vmem, size = 0x2000, scoped, tag = 'output window, operand 0']
    #allocation5 [shape = 's32[2]{0}', space=sflag, size = 0x8, scoped, tag = 'scoped memory for tpu_custom_call.1']
    %11 = vsyncpa [#allocation5], 0
    %s12 = scalar_lea.sflag [#allocation5], 1
    %13 = vsyncpa %s12, 0
    loop: start=0, step=1, limit=4
    $region2: #{tpu_custom_call.1} parent=1 // loop_pre_header
      _
    $region3: #{tpu_custom_call.1} parent=1 // loop_header
      %s15 = sphi 0, %s19
      %p16 = scmp.ge.s32.totalorder %s15, 4
      %s25 = sphi 0, %s27
      %s28 = sphi 0, %s25
      %s29 = sphi 0, %s28
      %s45 = sphi 0, %s29
      %s51 = sphi 0, %s53
      %s54 = sphi 0, %s51
      %s55 = sphi 0, %s54
      %s71 = sphi 0, %s55
      %s75 = sphi 0, %s75
      %s77 = sphi 0, %s75
      %s78 = sphi 0, %s77
      %s92 = sphi 0, %s78
      %s96 = sphi 0, %s96
      %s98 = sphi 0, %s96
      %s99 = sphi 0, %s98
      %s113 = sphi 0, %s99
      %s117 = sphi 0, %s117
      %s119 = sphi 0, %s117
      %s120 = sphi 0, %s119
      %s134 = sphi 0, %s120
      %s138 = sphi 0, %s138
      %s140 = sphi 0, %s138
      %s141 = sphi 0, %s140
      %s155 = sphi 0, %s141
      %s161 = sphi 0, %s163
      %s164 = sphi 0, %s161
      %s165 = sphi 0, %s164
      %s181 = sphi 0, %s165
    $region4: #{tpu_custom_call.1} parent=1 // loop_header_branch
      %18 = sbr.rel (%p16) target = $region8
    $region5: #{tpu_custom_call.1} parent=1 // loop_body
      %s20 = ssub.s32 %s15, 1
      %s21 = ssub.s32 %s15, 2
      %s22 = sadd.s32 %s15, 1
      %s23 = ssub.s32 %s15, %s22
      %p24 = scmp.eq.s32.totalorder %s23, 0
      %s26 = sadd.s32 %s25, 1
      %s27 = scalar_select %p24, %s25, %s26
      %p30 = pneg %p24
      %p31 = scmp.eq.s32.totalorder %s15, 1
      %p32 = por %p30, %p31
      %p33 = scmp.ne.s32.totalorder %s25, %s28
      %p34 = scmp.eq.s32.totalorder %s15, 0
      %p35 = por %p33, %p34
      %p36 = scmp.ne.s32.totalorder %s25, %s28
      %p37 = scmp.eq.s32.totalorder %s20, 1
      %p38 = por %p36, %p37
      %p39 = scmp.ne.s32.totalorder %s28, %s29
      %p40 = scmp.eq.s32.totalorder %s20, 0
      %p41 = por %p39, %p40
      %p42 = scmp.ne.s32.totalorder %s28, %s29
      %p43 = scmp.eq.s32.totalorder %s21, 1
      %p44 = por %p42, %p43
      %p46 = scmp.ne.s32.totalorder %s29, %s45
      %p47 = scmp.eq.s32.totalorder %s21, 0
      %p48 = por %p46, %p47
      %s49 = ssub.s32 %s15, %s22
      %p50 = scmp.eq.s32.totalorder %s49, 0
      %s52 = sadd.s32 %s51, 1
      %s53 = scalar_select %p50, %s51, %s52
      %p56 = pneg %p50
      %p57 = scmp.eq.s32.totalorder %s15, 1
      %p58 = por %p56, %p57
      %p59 = scmp.ne.s32.totalorder %s51, %s54
      %p60 = scmp.eq.s32.totalorder %s15, 0
      %p61 = por %p59, %p60
      %p62 = scmp.ne.s32.totalorder %s51, %s54
      %p63 = scmp.eq.s32.totalorder %s20, 1
      %p64 = por %p62, %p63
      %p65 = scmp.ne.s32.totalorder %s54, %s55
      %p66 = scmp.eq.s32.totalorder %s20, 0
      %p67 = por %p65, %p66
      %p68 = scmp.ne.s32.totalorder %s54, %s55
      %p69 = scmp.eq.s32.totalorder %s21, 1
      %p70 = por %p68, %p69
      %p72 = scmp.ne.s32.totalorder %s55, %s71
      %p73 = scmp.eq.s32.totalorder %s21, 0
      %p74 = por %p72, %p73
      %s76 = sadd.s32 %s75, 1
      %p79 = scmp.eq.s32.totalorder %s15, 1
      %p80 = scmp.ne.s32.totalorder %s75, %s77
      %p81 = scmp.eq.s32.totalorder %s15, 0
      %p82 = por %p80, %p81
      %p83 = scmp.ne.s32.totalorder %s75, %s77
      %p84 = scmp.eq.s32.totalorder %s20, 1
      %p85 = por %p83, %p84
      %p86 = scmp.ne.s32.totalorder %s77, %s78
      %p87 = scmp.eq.s32.totalorder %s20, 0
      %p88 = por %p86, %p87
      %p89 = scmp.ne.s32.totalorder %s77, %s78
      %p90 = scmp.eq.s32.totalorder %s21, 1
      %p91 = por %p89, %p90
      %p93 = scmp.ne.s32.totalorder %s78, %s92
      %p94 = scmp.eq.s32.totalorder %s21, 0
      %p95 = por %p93, %p94
      %s97 = sadd.s32 %s96, 1
      %p100 = scmp.eq.s32.totalorder %s15, 1
      %p101 = scmp.ne.s32.totalorder %s96, %s98
      %p102 = scmp.eq.s32.totalorder %s15, 0
      %p103 = por %p101, %p102
      %p104 = scmp.ne.s32.totalorder %s96, %s98
      %p105 = scmp.eq.s32.totalorder %s20, 1
      %p106 = por %p104, %p105
      %p107 = scmp.ne.s32.totalorder %s98, %s99
      %p108 = scmp.eq.s32.totalorder %s20, 0
      %p109 = por %p107, %p108
      %p110 = scmp.ne.s32.totalorder %s98, %s99
      %p111 = scmp.eq.s32.totalorder %s21, 1
      %p112 = por %p110, %p111
      %p114 = scmp.ne.s32.totalorder %s99, %s113
      %p115 = scmp.eq.s32.totalorder %s21, 0
      %p116 = por %p114, %p115
      %s118 = sadd.s32 %s117, 1
      %p121 = scmp.eq.s32.totalorder %s15, 1
      %p122 = scmp.ne.s32.totalorder %s117, %s119
      %p123 = scmp.eq.s32.totalorder %s15, 0
      %p124 = por %p122, %p123
      %p125 = scmp.ne.s32.totalorder %s117, %s119
      %p126 = scmp.eq.s32.totalorder %s20, 1
      %p127 = por %p125, %p126
      %p128 = scmp.ne.s32.totalorder %s119, %s120
      %p129 = scmp.eq.s32.totalorder %s20, 0
      %p130 = por %p128, %p129
      %p131 = scmp.ne.s32.totalorder %s119, %s120
      %p132 = scmp.eq.s32.totalorder %s21, 1
      %p133 = por %p131, %p132
      %p135 = scmp.ne.s32.totalorder %s120, %s134
      %p136 = scmp.eq.s32.totalorder %s21, 0
      %p137 = por %p135, %p136
      %s139 = sadd.s32 %s138, 1
      %p142 = scmp.eq.s32.totalorder %s15, 1
      %p143 = scmp.ne.s32.totalorder %s138, %s140
      %p144 = scmp.eq.s32.totalorder %s15, 0
      %p145 = por %p143, %p144
      %p146 = scmp.ne.s32.totalorder %s138, %s140
      %p147 = scmp.eq.s32.totalorder %s20, 1
      %p148 = por %p146, %p147
      %p149 = scmp.ne.s32.totalorder %s140, %s141
      %p150 = scmp.eq.s32.totalorder %s20, 0
      %p151 = por %p149, %p150
      %p152 = scmp.ne.s32.totalorder %s140, %s141
      %p153 = scmp.eq.s32.totalorder %s21, 1
      %p154 = por %p152, %p153
      %p156 = scmp.ne.s32.totalorder %s141, %s155
      %p157 = scmp.eq.s32.totalorder %s21, 0
      %p158 = por %p156, %p157
      %s159 = ssub.s32 %s15, %s22
      %p160 = scmp.eq.s32.totalorder %s159, 0
      %s162 = sadd.s32 %s161, 1
      %s163 = scalar_select %p160, %s161, %s162
      %p166 = pneg %p160
      %p167 = scmp.eq.s32.totalorder %s15, 1
      %p168 = por %p166, %p167
      %p169 = scmp.ne.s32.totalorder %s161, %s164
      %p170 = scmp.eq.s32.totalorder %s15, 0
      %p171 = por %p169, %p170
      %p172 = scmp.ne.s32.totalorder %s161, %s164
      %p173 = scmp.eq.s32.totalorder %s20, 1
      %p174 = por %p172, %p173
      %p175 = scmp.ne.s32.totalorder %s164, %s165
      %p176 = scmp.eq.s32.totalorder %s20, 0
      %p177 = por %p175, %p176
      %p178 = scmp.ne.s32.totalorder %s164, %s165
      %p179 = scmp.eq.s32.totalorder %s21, 1
      %p180 = por %p178, %p179
      %p182 = scmp.ne.s32.totalorder %s165, %s181
      %p183 = scmp.eq.s32.totalorder %s21, 0
      %p184 = por %p182, %p183
      %p185 = scmp.le.s32.totalorder 1, %s15
      %p186 = scmp.lt.s32.totalorder %s15, 3
      %p187 = pnand %p185, %p186
      %p188 = pneg %p187
      // Predicated region
      $region9: #{tpu_custom_call.1} parent=5 // pred_check
        _
      $region10: #{tpu_custom_call.1} parent=5 // pred_check_branch
        %190 = sbr.rel (%p187) target = $region12
      $region11: #{tpu_custom_call.1} parent=5 // pred_region
        %s191 = ssub.s32 %s15, 1
        // Predicated region
        $region13: #{tpu_custom_call.1} parent=11 // pred_check
          %p192 = pneg %p88
        $region14: #{tpu_custom_call.1} parent=11 // pred_check_branch
          %194 = sbr.rel (%p192) target = $region16
        $region15: #{tpu_custom_call.1} parent=11 // pred_region
          _
        $region16: #{tpu_custom_call.1} parent=11 // pred_fallthru
          _
        // Predicated region
        $region17: #{tpu_custom_call.1} parent=11 // pred_check
          %p195 = pneg %p109
        $region18: #{tpu_custom_call.1} parent=11 // pred_check_branch
          %197 = sbr.rel (%p195) target = $region20
        $region19: #{tpu_custom_call.1} parent=11 // pred_region
          _
        $region20: #{tpu_custom_call.1} parent=11 // pred_fallthru
          _
        // Predicated region
        $region21: #{tpu_custom_call.1} parent=11 // pred_check
          %p198 = pneg %p130
        $region22: #{tpu_custom_call.1} parent=11 // pred_check_branch
          %200 = sbr.rel (%p198) target = $region24
        $region23: #{tpu_custom_call.1} parent=11 // pred_region
          _
        $region24: #{tpu_custom_call.1} parent=11 // pred_fallthru
          _
        // Predicated region
        $region25: #{tpu_custom_call.1} parent=11 // pred_check
          %p201 = pneg %p151
        $region26: #{tpu_custom_call.1} parent=11 // pred_check_branch
          %203 = sbr.rel (%p201) target = $region28
        $region27: #{tpu_custom_call.1} parent=11 // pred_region
          _
        $region28: #{tpu_custom_call.1} parent=11 // pred_fallthru
          _
      $region12: #{tpu_custom_call.1} parent=5 // pred_fallthru
        _
      %p204 = scmp.lt.s32.totalorder %s15, 2
      // Predicated region
      $region29: #{tpu_custom_call.1} parent=5 // pred_check
        %p205 = pneg %p204
      $region30: #{tpu_custom_call.1} parent=5 // pred_check_branch
        %207 = sbr.rel (%p205) target = $region32
      $region31: #{tpu_custom_call.1} parent=5 // pred_region
        // Predicated region
        $region33: #{tpu_custom_call.1} parent=31 // pred_check
          %p208 = pneg %p35
        $region34: #{tpu_custom_call.1} parent=31 // pred_check_branch
          %210 = sbr.rel (%p208) target = $region36
        $region35: #{tpu_custom_call.1} parent=31 // pred_region
          %s211 = smul.u32 2, %s15
          %p212 = scmp.lt.s32.totalorder %s211, 3
          %s213 = scalar_select %p212, %s211, 3
          %s214 = smul.addr %s213, 4
          %s215 = scalar_lea.vmem %s0, %s214
          %s216 = smul.u32 2, %s15
        $region36: #{tpu_custom_call.1} parent=31 // pred_fallthru
          _
        // Predicated region
        $region37: #{tpu_custom_call.1} parent=31 // pred_check
          %p217 = pneg %p61
        $region38: #{tpu_custom_call.1} parent=31 // pred_check_branch
          %219 = sbr.rel (%p217) target = $region40
        $region39: #{tpu_custom_call.1} parent=31 // pred_region
          %s220 = smul.u32 2, %s15
          %p221 = scmp.lt.s32.totalorder %s220, 3
          %s222 = scalar_select %p221, %s220, 3
          %s223 = smul.addr %s222, 2
          %s224 = scalar_lea.vmem %s1, %s223
          %s225 = smul.u32 2, %s15
        $region40: #{tpu_custom_call.1} parent=31 // pred_fallthru
          _
      $region32: #{tpu_custom_call.1} parent=5 // pred_fallthru
        _
      %p226 = scmp.le.s32.totalorder 1, %s15
      %p227 = scmp.lt.s32.totalorder %s15, 3
      %p228 = pnand %p226, %p227
      %p229 = pneg %p228
      // Predicated region
      $region41: #{tpu_custom_call.1} parent=5 // pred_check
        _
      $region42: #{tpu_custom_call.1} parent=5 // pred_check_branch
        %231 = sbr.rel (%p228) target = $region44
      $region43: #{tpu_custom_call.1} parent=5 // pred_region
        %s232 = ssub.s32 %s15, 1
        %s233 = smul.u32 2, %s20
        %p234 = scmp.lt.s32.totalorder %s233, 3
        %s235 = scalar_select %p234, %s233, 3
        %s236 = smul.addr %s235, 4
        %s237 = scalar_lea.vmem %s0, %s236
        %p238 = pneg %p41
        %p239 = pneg %p38
        %s240 = smul.u32 2, %s20
        %p241 = scmp.lt.s32.totalorder %s240, 3
        %s242 = scalar_select %p241, %s240, 3
        %s243 = smul.addr %s242, 2
        %s244 = scalar_lea.vmem %s1, %s243
        %p245 = pneg %p67
        %p246 = pneg %p64
        %p247 = pneg %p88
        %p248 = pneg %p85
        %p249 = pneg %p109
        %p250 = pneg %p106
        %p251 = pneg %p130
        %p252 = pneg %p127
        %p253 = pneg %p151
        %p254 = pneg %p148
        %p255 = pneg %p177
        %p256 = pneg %p174
        %s257 = sand.u32 %s164, 1
        %s258 = scalar_lea.sflag [#allocation5], %s257
        %s259 = sand.u32 %s164, 1
        %s260 = smul.addr %s259, 8
        %s261 = scalar_lea.vmem [#allocation4], %s260
        %s262 = smul.u32 2, %s20
        %p263 = scmp.lt.s32.totalorder %s262, 3
        %s264 = scalar_select %p263, %s262, 3
        %s265 = smul.addr %s264, 4
        %s266 = scalar_lea.vmem %s0, %s265
        %s267 = smul.u32 2, %s20
        %s268 = smul.u32 2, %s20
        %p269 = scmp.lt.s32.totalorder %s268, 3
        %s270 = scalar_select %p269, %s268, 3
        %s271 = smul.addr %s270, 2
        %s272 = scalar_lea.vmem %s1, %s271
        %s273 = smul.u32 2, %s20
        %s274 = smul.u32 2, %s20
        %p277 = scmp.eq.s32.totalorder %s20, 0
        // Predicated region
        $region45: #{tpu_custom_call.1} parent=43 // pred_check
          %p278 = pneg %p277
        $region46: #{tpu_custom_call.1} parent=43 // pred_check_branch
          %280 = sbr.rel (%p278) target = $region48
        $region47: #{tpu_custom_call.1} parent=43 // pred_region
          %281 = vst [vmem:[#allocation3] sm:$0xff] 0
          %282 = vst [vmem:[#allocation3 + $0x8] sm:$0xff] 0
          %283 = vst [vmem:[#allocation3 + $0x10] sm:$0xff] 0
          %284 = vst [vmem:[#allocation3 + $0x18] sm:$0xff] 0
          %285 = vst [vmem:[#allocation3 + $0x20] sm:$0xff] 0
          %286 = vst [vmem:[#allocation3 + $0x28] sm:$0xff] 0
          %287 = vst [vmem:[#allocation3 + $0x30] sm:$0x33] 0
          %288 = vst [vmem:[#allocation3 + $0x38] sm:$0x33] 0
          %289 = vst [vmem:[#allocation3 + $0x40] sm:$0x33] 0
          %290 = vst [vmem:[#allocation2] sm:$0xff] 0
          %291 = vst [vmem:[#allocation2 + $0x8] sm:$0xff] 0
          %292 = vst [vmem:[#allocation2 + $0x10] sm:$0xff] 0
          %293 = vst [vmem:[#allocation2 + $0x18] sm:$0xff] 0
          %294 = vst [vmem:[#allocation2 + $0x20] sm:$0xff] 0
          %295 = vst [vmem:[#allocation2 + $0x28] sm:$0xff] 0
          %296 = vst [vmem:[#allocation2 + $0x30] sm:$0xff] 0
          %297 = vst [vmem:[#allocation2 + $0x38] sm:$0xff] 0
          %298 = vst [vmem:[#allocation2 + $0x40] sm:$0xff] 0
          %299 = vst [vmem:[#allocation2 + $0x48] sm:$0xff] 0
          %300 = vst [vmem:[#allocation2 + $0x50] sm:$0xff] 0
          %301 = vst [vmem:[#allocation2 + $0x58] sm:$0xff] 0
          %302 = vst [vmem:[#allocation2 + $0x60] sm:$0xff] 0
          %303 = vst [vmem:[#allocation2 + $0x68] sm:$0xff] 0
          %304 = vst [vmem:[#allocation2 + $0x70] sm:$0xff] 0
          %305 = vst [vmem:[#allocation2 + $0x78] sm:$0xff] 0
          %306 = vst [vmem:[#allocation2 + $0x80] sm:$0xff] 0
          %307 = vst [vmem:[#allocation2 + $0x88] sm:$0xff] 0
          %308 = vst [vmem:[#allocation2 + $0x90] sm:$0xff] 0
          %309 = vst [vmem:[#allocation2 + $0x98] sm:$0xff] 0
        $region48: #{tpu_custom_call.1} parent=43 // pred_fallthru
          _
        %v310 = vld [vmem:[%s266] sm:$0xf]
        %311 = vst [vmem:[#allocation3 + $0x4] sm:$0xf] %v310
        %v312 = vld [vmem:[%s272] sm:$0x3]
        %314 = vset.pattern.permute.xlu0 0
        %315 = vperm.xlu0 %314, %v312
        %v316 = vpop.permute.xlu0 %315
        %v319 = vunpack.c.l.s4 269488144
        %v320 = vunpack.c.0.s8 %v319
        %v321 = vperm.slane %v316, %v320
        %322 = vst [vmem:[#allocation3 + $0x34] sm:$0x3] %v321
        %s323 = scalar_lea.vmem %s266, 4
        %v324 = vld [vmem:[%s323] sm:$0xf]
        %325 = vst [vmem:[#allocation3 + $0x10] sm:$0xf] %v324
        %s326 = scalar_lea.vmem %s272, 2
        %v327 = vld [vmem:[%s326] sm:$0x3]
        %329 = vset.pattern.permute.xlu0 0
        %330 = vperm.xlu0 %329, %v327
        %v331 = vpop.permute.xlu0 %330
        %v334 = vunpack.c.l.s4 269488144
        %v335 = vunpack.c.0.s8 %v334
        %v336 = vperm.slane %v331, %v335
        %337 = vst [vmem:[#allocation3 + $0x40] sm:$0x3] %v336
        %vm338 = vcmask 1042434
        %vm339 = vsmask.f32 2304
        %vm340 = vmand %vm338, %vm339
        %vm341 = vcmask 1046534
        %vm342 = vsmask.f32 6400
        %vm343 = vmand %vm341, %vm342
        %vm344 = vmor %vm343, %vm340
        %v345 = vld [vmem:[#allocation2 + $0x8] sm:$0x44]
        %v346 = vsel %vm344, 1065369472, %v345
        %347 = vst [vmem:[#allocation2 + $0x8] sm:$0x44] %v346
        %v348 = vld [vmem:[#allocation3 + $0x4] sm:$0xff]
        %350 = vrot.lane.b32.xlu0 %v348, 126
        %v351 = vpop.permute.xlu0 %350
        %v352 = vrot.slane %v351, 4
        %vm353 = vcmask 1031168
        %v354 = vsel %vm353, %v351, %v352
        %356 = vst [vmem:[#allocation2] sm:$0xf] %v354
        %v357 = vld [vmem:[#allocation3 + $0x34] sm:$0x33]
        %359 = vrot.lane.b32.xlu0 %v357, 126
        %v360 = vpop.permute.xlu0 %359
        %v361 = vrot.slane %v360, 4
        %v362 = vsel %vm353, %v360, %v361
        %364 = vst [vmem:[#allocation2 + $0x8] sm:$0x3] %v362
        %v365 = vld [vmem:[#allocation3 + $0x10] sm:$0xff]
        %367 = vrot.lane.b32.xlu0 %v365, 126
        %v368 = vpop.permute.xlu0 %367
        %v369 = vrot.slane %v368, 4
        %v370 = vsel %vm353, %v368, %v369
        %372 = vst [vmem:[#allocation2 + $0x4] sm:$0xf] %v370
        %v373 = vld [vmem:[#allocation3 + $0x40] sm:$0x33]
        %375 = vrot.lane.b32.xlu0 %v373, 126
        %v376 = vpop.permute.xlu0 %375
        %v377 = vrot.slane %v376, 4
        %v378 = vsel %vm353, %v376, %v377
        %380 = vst [vmem:[#allocation2 + $0xc] sm:$0x3] %v378
        %v381 = vld [vmem:[#allocation3 + $0x4] sm:$0xff]
        %383 = vrot.lane.b32.xlu0 %v381, 127
        %v384 = vpop.permute.xlu0 %383
        %v385 = vrot.slane %v384, 4
        %vm386 = vcmask 1039360
        %v387 = vsel %vm386, %v384, %v385
        %389 = vst [vmem:[#allocation2 + $0x10] sm:$0xf] %v387
        %v390 = vld [vmem:[#allocation3 + $0x34] sm:$0x33]
        %392 = vrot.lane.b32.xlu0 %v390, 127
        %v393 = vpop.permute.xlu0 %392
        %v394 = vrot.slane %v393, 4
        %v395 = vsel %vm386, %v393, %v394
        %397 = vst [vmem:[#allocation2 + $0x18] sm:$0x3] %v395
        %v398 = vld [vmem:[#allocation3 + $0x10] sm:$0xff]
        %400 = vrot.lane.b32.xlu0 %v398, 127
        %v401 = vpop.permute.xlu0 %400
        %v402 = vrot.slane %v401, 4
        %v403 = vsel %vm386, %v401, %v402
        %405 = vst [vmem:[#allocation2 + $0x14] sm:$0xf] %v403
        %v406 = vld [vmem:[#allocation3 + $0x40] sm:$0x33]
        %408 = vrot.lane.b32.xlu0 %v406, 127
        %v409 = vpop.permute.xlu0 %408
        %v410 = vrot.slane %v409, 4
        %v411 = vsel %vm386, %v409, %v410
        %413 = vst [vmem:[#allocation2 + $0x1c] sm:$0x3] %v411
        %v414 = vld [vmem:[#allocation3 + $0x4] sm:$0xf]
        %415 = vst [vmem:[#allocation2 + $0x20] sm:$0xf] %v414
        %v416 = vld [vmem:[#allocation3 + $0x34] sm:$0x3]
        %417 = vst [vmem:[#allocation2 + $0x28] sm:$0x3] %v416
        %v418 = vld [vmem:[#allocation3 + $0x10] sm:$0xf]
        %419 = vst [vmem:[#allocation2 + $0x24] sm:$0xf] %v418
        %v420 = vld [vmem:[#allocation3 + $0x40] sm:$0x3]
        %421 = vst [vmem:[#allocation2 + $0x2c] sm:$0x3] %v420
        %v422 = vld [vmem:[#allocation3] sm:$0xff]
        %424 = vrot.lane.b32.xlu0 %v422, 1
        %v425 = vpop.permute.xlu0 %424
        %v426 = vrot.slane %v425, 4
        %vm427 = vcmask 7168
        %v428 = vsel %vm427, %v425, %v426
        %430 = vst [vmem:[#allocation2 + $0x30] sm:$0xf] %v428
        %v431 = vld [vmem:[#allocation3 + $0x30] sm:$0x33]
        %433 = vrot.lane.b32.xlu0 %v431, 1
        %v434 = vpop.permute.xlu0 %433
        %v435 = vrot.slane %v434, 4
        %v436 = vsel %vm427, %v434, %v435
        %438 = vst [vmem:[#allocation2 + $0x38] sm:$0x3] %v436
        %v439 = vld [vmem:[#allocation3 + $0xc] sm:$0xff]
        %441 = vrot.lane.b32.xlu0 %v439, 1
        %v442 = vpop.permute.xlu0 %441
        %v443 = vrot.slane %v442, 4
        %v444 = vsel %vm427, %v442, %v443
        %446 = vst [vmem:[#allocation2 + $0x34] sm:$0xf] %v444
        %v447 = vld [vmem:[#allocation3 + $0x3c] sm:$0x33]
        %449 = vrot.lane.b32.xlu0 %v447, 1
        %v450 = vpop.permute.xlu0 %449
        %v451 = vrot.slane %v450, 4
        %v452 = vsel %vm427, %v450, %v451
        %454 = vst [vmem:[#allocation2 + $0x3c] sm:$0x3] %v452
        %v455 = vld [vmem:[#allocation3] sm:$0xff]
        %457 = vrot.lane.b32.xlu0 %v455, 2
        %v458 = vpop.permute.xlu0 %457
        %v459 = vrot.slane %v458, 4
        %vm460 = vcmask 15360
        %v461 = vsel %vm460, %v458, %v459
        %463 = vst [vmem:[#allocation2 + $0x40] sm:$0xf] %v461
        %v464 = vld [vmem:[#allocation3 + $0x30] sm:$0x33]
        %466 = vrot.lane.b32.xlu0 %v464, 2
        %v467 = vpop.permute.xlu0 %466
        %v468 = vrot.slane %v467, 4
        %v469 = vsel %vm460, %v467, %v468
        %471 = vst [vmem:[#allocation2 + $0x48] sm:$0x3] %v469
        %v472 = vld [vmem:[#allocation3 + $0xc] sm:$0xff]
        %474 = vrot.lane.b32.xlu0 %v472, 2
        %v475 = vpop.permute.xlu0 %474
        %v476 = vrot.slane %v475, 4
        %v477 = vsel %vm460, %v475, %v476
        %479 = vst [vmem:[#allocation2 + $0x44] sm:$0xf] %v477
        %v480 = vld [vmem:[#allocation3 + $0x3c] sm:$0x33]
        %482 = vrot.lane.b32.xlu0 %v480, 2
        %v483 = vpop.permute.xlu0 %482
        %v484 = vrot.slane %v483, 4
        %v485 = vsel %vm460, %v483, %v484
        %487 = vst [vmem:[#allocation2 + $0x4c] sm:$0x3] %v485
        %v488 = vld [vmem:[%s2] sm:$0xf]
        %v489 = vld [vmem:[%s2 + $0x4] sm:$0xf]
        %v490 = vld [vmem:[%s2 + $0x8] sm:$0xf]
        %v491 = vld [vmem:[%s2 + $0xc] sm:$0xf]
        %v492 = vld [vmem:[#allocation2] sm:$0xff]
        %v493 = vld [vmem:[#allocation2 + $0x8] sm:$0xff]
        %v494 = vld [vmem:[#allocation2 + $0x10] sm:$0xff]
        %v495 = vld [vmem:[#allocation2 + $0x18] sm:$0xff]
        %v496 = vld [vmem:[#allocation2 + $0x20] sm:$0xff]
        %v497 = vld [vmem:[#allocation2 + $0x28] sm:$0xff]
        %v498 = vld [vmem:[#allocation2 + $0x30] sm:$0xff]
        %v499 = vld [vmem:[#allocation2 + $0x38] sm:$0xff]
        %v500 = vld [vmem:[#allocation2 + $0x40] sm:$0xff]
        %v501 = vld [vmem:[#allocation2 + $0x48] sm:$0xff]
        %v506 = vunpack.c.l.b16 %v488
        %v507 = vunpack.c.l.b16 %v489
        %v508 = vunpack.c.l.b16 %v490
        %v509 = vunpack.c.l.b16 %v491
        %v510 = vpack.c.b16 %v507, %v506
        %v511 = vpack.c.b16 %v509, %v508
        %v522 = vunpack.c.l.b16 %v492
        %v523 = vunpack.c.h.b16 %v492
        %v524 = vunpack.c.l.b16 %v493
        %v525 = vunpack.c.h.b16 %v493
        %v526 = vunpack.c.l.b16 %v494
        %v527 = vunpack.c.h.b16 %v494
        %v528 = vunpack.c.l.b16 %v495
        %v529 = vunpack.c.h.b16 %v495
        %v530 = vunpack.c.l.b16 %v496
        %v531 = vunpack.c.h.b16 %v496
        %v532 = vunpack.c.l.b16 %v497
        %v533 = vunpack.c.h.b16 %v497
        %v534 = vunpack.c.l.b16 %v498
        %v535 = vunpack.c.h.b16 %v498
        %v536 = vunpack.c.l.b16 %v499
        %v537 = vunpack.c.h.b16 %v499
        %v538 = vunpack.c.l.b16 %v500
        %v539 = vunpack.c.h.b16 %v500
        %v540 = vunpack.c.l.b16 %v501
        %v541 = vunpack.c.h.b16 %v501
        %v542 = vpack.c.b16 %v524, %v522
        %v543 = vpack.c.b16 %v525, %v523
        %v544 = vpack.c.b16 %v528, %v526
        %v545 = vpack.c.b16 %v529, %v527
        %v546 = vpack.c.b16 %v532, %v530
        %v547 = vpack.c.b16 %v533, %v531
        %v548 = vpack.c.b16 %v536, %v534
        %v549 = vpack.c.b16 %v537, %v535
        %v550 = vpack.c.b16 %v540, %v538
        %v551 = vpack.c.b16 %v541, %v539
        %vm562 = vcmask 654336
        %v564 = vsel %vm562, %v510, 0
        %v567 = vsel %vm562, %v511, 0
        %569 = vmatpush.bf16.msra.mxu0 0
        %570 = vmatpush.bf16.msra.mxu0 0
        %571 = vmatpush.bf16.msra.mxu0 0
        %572 = vmatpush.bf16.msra.mxu0 %v550
        %573 = vmatpush.bf16.msra.mxu0 %v548
        %574 = vmatpush.bf16.msra.mxu0 %v546
        %575 = vmatpush.bf16.msra.mxu0 %v544
        %576 = vmatpush.bf16.msra.mxu0 %v542
        %577 = vmatmul.bf16.gmra.mxu0 %v564
        %v578 = vpop.f32.mrf.mxu0
        %v579 = vadd.f32 0.0, %v578
        %v580 = vpop.f32.mrf.mxu0
        %v581 = vadd.f32 0.0, %v580
        %582 = vmatmul.bf16.gmra.mxu0 %v567
        %v583 = vpop.f32.mrf.mxu0
        %v584 = vadd.f32 0.0, %v583
        %v585 = vpop.f32.mrf.mxu0
        %v586 = vadd.f32 0.0, %v585
        %587 = vdwg.mxu0
        %588 = vmatpush.bf16.msra.mxu0 0
        %589 = vmatpush.bf16.msra.mxu0 0
        %590 = vmatpush.bf16.msra.mxu0 0
        %591 = vmatpush.bf16.msra.mxu0 %v551
        %592 = vmatpush.bf16.msra.mxu0 %v549
        %593 = vmatpush.bf16.msra.mxu0 %v547
        %594 = vmatpush.bf16.msra.mxu0 %v545
        %595 = vmatpush.bf16.msra.mxu0 %v543
        %596 = vmatmul.bf16.gmra.mxu0 %v564
        %v597 = vpop.f32.mrf.mxu0
        %v598 = vadd.f32 0.0, %v597
        %v599 = vpop.f32.mrf.mxu0
        %v600 = vadd.f32 0.0, %v599
        %601 = vmatmul.bf16.gmra.mxu0 %v567
        %v602 = vpop.f32.mrf.mxu0
        %v603 = vadd.f32 0.0, %v602
        %v604 = vpop.f32.mrf.mxu0
        %v605 = vadd.f32 0.0, %v604
        %606 = vdwg.mxu0
        %v607 = vadd.f32 %v579, %v581
        %v608 = vadd.f32 %v607, %v584
        %v609 = vadd.f32 %v608, %v586
        %610 = vadd.xlane.f32.xlu0 %v609
        %v611 = vpop.xlane.xlu0 %610
        %v612 = vrot.slane %v611, 4
        %v613 = vadd.f32 %v611, %v612
        %v614 = vrot.slane %v613, 2
        %v615 = vadd.f32 %v613, %v614
        %v616 = vrot.slane %v615, 1
        %v617 = vadd.f32 %v615, %v616
        %s618 = vtos %v617
        %v619 = vrcp.pop 4096.0
        %v620 = vmul.f32 4096.0, %v619
        %v621 = vsub.f32 1.0, %v620
        %v622 = vmul.f32 %v619, %v621
        %v623 = vadd.f32 %v619, %v622
        %vm624 = vweird.f32 %v619
        %v625 = vsel %vm624, %v619, %v623
        %s626 = vtos %v625
        %s627 = smul.f32 %s618, %s626
        %v628 = vmul.f32 %v579, %v579
        %v629 = vmul.f32 %v581, %v581
        %v630 = vmul.f32 %v584, %v584
        %v631 = vmul.f32 %v586, %v586
        %v632 = vadd.f32 %v628, %v629
        %v633 = vadd.f32 %v632, %v630
        %v634 = vadd.f32 %v633, %v631
        %635 = vadd.xlane.f32.xlu0 %v634
        %v636 = vpop.xlane.xlu0 %635
        %v637 = vrot.slane %v636, 4
        %v638 = vadd.f32 %v636, %v637
        %v639 = vrot.slane %v638, 2
        %v640 = vadd.f32 %v638, %v639
        %v641 = vrot.slane %v640, 1
        %v642 = vadd.f32 %v640, %v641
        %s643 = vtos %v642
        %v644 = vrcp.pop 4096.0
        %v645 = vmul.f32 4096.0, %v644
        %v646 = vsub.f32 1.0, %v645
        %v647 = vmul.f32 %v644, %v646
        %v648 = vadd.f32 %v644, %v647
        %vm649 = vweird.f32 %v644
        %v650 = vsel %vm649, %v644, %v648
        %s651 = vtos %v650
        %s652 = smul.f32 %s643, %s651
        %s653 = smul.f32 %s627, %s627
        %s654 = ssub.f32 %s652, %s653
        %s655 = sadd.f32 %s654, 1e-05
        %v656 = vstv %s655
        %v657 = vrsqrt.pop %v656
        %v658 = vmul.f32 %v657, %v656
        %v659 = vmul.f32 %v658, %v657
        %v660 = vmul.f32 0.5, %v659
        %v661 = vsub.f32 1.5, %v660
        %v662 = vmul.f32 %v657, %v661
        %vm663 = vweird.f32 %v656
        %vm664 = vweird.f32 %v657
        %vm665 = vmor %vm663, %vm664
        %v666 = vsel %vm665, %v657, %v662
        %s667 = vtos %v666
        %v668 = vld [vmem:[%s3] sm:$0xff]
        %v669 = vld [vmem:[%s3 + $0x8] sm:$0xff]
        %v670 = vld [vmem:[%s3 + $0x10] sm:$0xff]
        %v671 = vld [vmem:[%s3 + $0x18] sm:$0xff]
        %v672 = vstv %s667
        %v673 = vmul.f32 %v668, %v672
        %v674 = vmul.f32 %v669, %v672
        %v675 = vmul.f32 %v670, %v672
        %v676 = vmul.f32 %v671, %v672
        %v677 = vld [vmem:[%s4] sm:$0xff]
        %v678 = vld [vmem:[%s4 + $0x8] sm:$0xff]
        %v679 = vld [vmem:[%s4 + $0x10] sm:$0xff]
        %v680 = vld [vmem:[%s4 + $0x18] sm:$0xff]
        %v681 = vstv %s627
        %v682 = vmul.f32 %v681, %v673
        %v683 = vmul.f32 %v681, %v674
        %v684 = vmul.f32 %v681, %v675
        %v685 = vmul.f32 %v681, %v676
        %v686 = vsub.f32 %v677, %v682
        %v687 = vsub.f32 %v678, %v683
        %v688 = vsub.f32 %v679, %v684
        %v689 = vsub.f32 %v680, %v685
        %691 = vset.pattern.permute.xlu0 0
        %692 = vperm.xlu0 %691, %v673
        %v693 = vpop.permute.xlu0 %692
        %696 = vset.pattern.permute.xlu0 0
        %697 = vperm.xlu0 %696, %v674
        %v698 = vpop.permute.xlu0 %697
        %701 = vset.pattern.permute.xlu0 0
        %702 = vperm.xlu0 %701, %v675
        %v703 = vpop.permute.xlu0 %702
        %706 = vset.pattern.permute.xlu0 0
        %707 = vperm.xlu0 %706, %v676
        %v708 = vpop.permute.xlu0 %707
        %v710 = vmul.f32 %v579, %v693
        %v711 = vmul.f32 %v581, %v698
        %v712 = vmul.f32 %v584, %v703
        %v713 = vmul.f32 %v586, %v708
        %715 = vset.pattern.permute.xlu0 0
        %716 = vperm.xlu0 %715, %v686
        %v717 = vpop.permute.xlu0 %716
        %720 = vset.pattern.permute.xlu0 0
        %721 = vperm.xlu0 %720, %v687
        %v722 = vpop.permute.xlu0 %721
        %725 = vset.pattern.permute.xlu0 0
        %726 = vperm.xlu0 %725, %v688
        %v727 = vpop.permute.xlu0 %726
        %730 = vset.pattern.permute.xlu0 0
        %731 = vperm.xlu0 %730, %v689
        %v732 = vpop.permute.xlu0 %731
        %v734 = vadd.f32 %v710, %v717
        %v735 = vadd.f32 %v711, %v722
        %v736 = vadd.f32 %v712, %v727
        %v737 = vadd.f32 %v713, %v732
        %v738 = vxor.u32 %v736, 2147483648
        %v739 = vxor.u32 %v737, 2147483648
        %v740 = vmul.f32 %v738, 1.442695
        %v741 = vpow.pop %v740
        %v742 = vmul.f32 %v739, 1.442695
        %v743 = vpow.pop %v742
        %v744 = vadd.f32 %v741, 1.0
        %v745 = vadd.f32 %v743, 1.0
        %v746 = vrcp.pop %v744
        %v747 = vmul.f32 %v744, %v746
        %v748 = vsub.f32 1.0, %v747
        %v749 = vmul.f32 %v746, %v748
        %v750 = vadd.f32 %v746, %v749
        %vm751 = vweird.f32 %v744
        %vm752 = vweird.f32 %v746
        %vm753 = vmor %vm751, %vm752
        %v754 = vsel %vm753, %v746, %v750
        %v755 = vand.u32 2147483647, %v744
        %vm756 = vcmp.eq.f32.partialorder %v755, 8.507059e+37
        %v757 = vand.u32 %v744, 2147483648
        %v758 = vor.u32 1.1754944e-38, %v757
        %v759 = vsel %vm756, %v758, %v754
        %v760 = vmul.f32 1.0, %v759
        %v761 = vrcp.pop %v745
        %v762 = vmul.f32 %v745, %v761
        %v763 = vsub.f32 1.0, %v762
        %v764 = vmul.f32 %v761, %v763
        %v765 = vadd.f32 %v761, %v764
        %vm766 = vweird.f32 %v745
        %vm767 = vweird.f32 %v761
        %vm768 = vmor %vm766, %vm767
        %v769 = vsel %vm768, %v761, %v765
        %v770 = vand.u32 2147483647, %v745
        %vm771 = vcmp.eq.f32.partialorder %v770, 8.507059e+37
        %v772 = vand.u32 %v745, 2147483648
        %v773 = vor.u32 1.1754944e-38, %v772
        %v774 = vsel %vm771, %v773, %v769
        %v775 = vmul.f32 1.0, %v774
        %v776 = vmul.f32 %v734, %v760
        %v777 = vmul.f32 %v735, %v775
        %v778 = vpack.c.bf16 %v776, %v776
        %v779 = vpack.c.bf16 %v777, %v777
        %780 = vst [vmem:[#allocation3 + $0x4] sm:$0xf] %v778
        %781 = vst [vmem:[#allocation3 + $0x1c] sm:$0xf] %v779
        %v782 = vadd.f32 %v598, %v600
        %v783 = vadd.f32 %v782, %v603
        %v784 = vadd.f32 %v783, %v605
        %785 = vadd.xlane.f32.xlu0 %v784
        %v786 = vpop.xlane.xlu0 %785
        %v787 = vrot.slane %v786, 4
        %v788 = vadd.f32 %v786, %v787
        %v789 = vrot.slane %v788, 2
        %v790 = vadd.f32 %v788, %v789
        %v791 = vrot.slane %v790, 1
        %v792 = vadd.f32 %v790, %v791
        %s793 = vtos %v792
        %v794 = vrcp.pop 4096.0
        %v795 = vmul.f32 4096.0, %v794
        %v796 = vsub.f32 1.0, %v795
        %v797 = vmul.f32 %v794, %v796
        %v798 = vadd.f32 %v794, %v797
        %vm799 = vweird.f32 %v794
        %v800 = vsel %vm799, %v794, %v798
        %s801 = vtos %v800
        %s802 = smul.f32 %s793, %s801
        %v803 = vmul.f32 %v598, %v598
        %v804 = vmul.f32 %v600, %v600
        %v805 = vmul.f32 %v603, %v603
        %v806 = vmul.f32 %v605, %v605
        %v807 = vadd.f32 %v803, %v804
        %v808 = vadd.f32 %v807, %v805
        %v809 = vadd.f32 %v808, %v806
        %810 = vadd.xlane.f32.xlu0 %v809
        %v811 = vpop.xlane.xlu0 %810
        %v812 = vrot.slane %v811, 4
        %v813 = vadd.f32 %v811, %v812
        %v814 = vrot.slane %v813, 2
        %v815 = vadd.f32 %v813, %v814
        %v816 = vrot.slane %v815, 1
        %v817 = vadd.f32 %v815, %v816
        %s818 = vtos %v817
        %v819 = vrcp.pop 4096.0
        %v820 = vmul.f32 4096.0, %v819
        %v821 = vsub.f32 1.0, %v820
        %v822 = vmul.f32 %v819, %v821
        %v823 = vadd.f32 %v819, %v822
        %vm824 = vweird.f32 %v819
        %v825 = vsel %vm824, %v819, %v823
        %s826 = vtos %v825
        %s827 = smul.f32 %s818, %s826
        %s828 = smul.f32 %s802, %s802
        %s829 = ssub.f32 %s827, %s828
        %s830 = sadd.f32 %s829, 1e-05
        %v831 = vstv %s830
        %v832 = vrsqrt.pop %v831
        %v833 = vmul.f32 %v832, %v831
        %v834 = vmul.f32 %v833, %v832
        %v835 = vmul.f32 0.5, %v834
        %v836 = vsub.f32 1.5, %v835
        %v837 = vmul.f32 %v832, %v836
        %vm838 = vweird.f32 %v831
        %vm839 = vweird.f32 %v832
        %vm840 = vmor %vm838, %vm839
        %v841 = vsel %vm840, %v832, %v837
        %s842 = vtos %v841
        %v843 = vld [vmem:[%s3] sm:$0xff]
        %v844 = vld [vmem:[%s3 + $0x8] sm:$0xff]
        %v845 = vld [vmem:[%s3 + $0x10] sm:$0xff]
        %v846 = vld [vmem:[%s3 + $0x18] sm:$0xff]
        %v847 = vstv %s842
        %v848 = vmul.f32 %v843, %v847
        %v849 = vmul.f32 %v844, %v847
        %v850 = vmul.f32 %v845, %v847
        %v851 = vmul.f32 %v846, %v847
        %v852 = vld [vmem:[%s4] sm:$0xff]
        %v853 = vld [vmem:[%s4 + $0x8] sm:$0xff]
        %v854 = vld [vmem:[%s4 + $0x10] sm:$0xff]
        %v855 = vld [vmem:[%s4 + $0x18] sm:$0xff]
        %v856 = vstv %s802
        %v857 = vmul.f32 %v856, %v848
        %v858 = vmul.f32 %v856, %v849
        %v859 = vmul.f32 %v856, %v850
        %v860 = vmul.f32 %v856, %v851
        %v861 = vsub.f32 %v852, %v857
        %v862 = vsub.f32 %v853, %v858
        %v863 = vsub.f32 %v854, %v859
        %v864 = vsub.f32 %v855, %v860
        %866 = vset.pattern.permute.xlu0 0
        %867 = vperm.xlu0 %866, %v848
        %v868 = vpop.permute.xlu0 %867
        %871 = vset.pattern.permute.xlu0 0
        %872 = vperm.xlu0 %871, %v849
        %v873 = vpop.permute.xlu0 %872
        %876 = vset.pattern.permute.xlu0 0
        %877 = vperm.xlu0 %876, %v850
        %v878 = vpop.permute.xlu0 %877
        %881 = vset.pattern.permute.xlu0 0
        %882 = vperm.xlu0 %881, %v851
        %v883 = vpop.permute.xlu0 %882
        %v885 = vmul.f32 %v598, %v868
        %v886 = vmul.f32 %v600, %v873
        %v887 = vmul.f32 %v603, %v878
        %v888 = vmul.f32 %v605, %v883
        %890 = vset.pattern.permute.xlu0 0
        %891 = vperm.xlu0 %890, %v861
        %v892 = vpop.permute.xlu0 %891
        %895 = vset.pattern.permute.xlu0 0
        %896 = vperm.xlu0 %895, %v862
        %v897 = vpop.permute.xlu0 %896
        %900 = vset.pattern.permute.xlu0 0
        %901 = vperm.xlu0 %900, %v863
        %v902 = vpop.permute.xlu0 %901
        %905 = vset.pattern.permute.xlu0 0
        %906 = vperm.xlu0 %905, %v864
        %v907 = vpop.permute.xlu0 %906
        %v909 = vadd.f32 %v885, %v892
        %v910 = vadd.f32 %v886, %v897
        %v911 = vadd.f32 %v887, %v902
        %v912 = vadd.f32 %v888, %v907
        %v913 = vxor.u32 %v911, 2147483648
        %v914 = vxor.u32 %v912, 2147483648
        %v915 = vmul.f32 %v913, 1.442695
        %v916 = vpow.pop %v915
        %v917 = vmul.f32 %v914, 1.442695
        %v918 = vpow.pop %v917
        %v919 = vadd.f32 %v916, 1.0
        %v920 = vadd.f32 %v918, 1.0
        %v921 = vrcp.pop %v919
        %v922 = vmul.f32 %v919, %v921
        %v923 = vsub.f32 1.0, %v922
        %v924 = vmul.f32 %v921, %v923
        %v925 = vadd.f32 %v921, %v924
        %vm926 = vweird.f32 %v919
        %vm927 = vweird.f32 %v921
        %vm928 = vmor %vm926, %vm927
        %v929 = vsel %vm928, %v921, %v925
        %v930 = vand.u32 2147483647, %v919
        %vm931 = vcmp.eq.f32.partialorder %v930, 8.507059e+37
        %v932 = vand.u32 %v919, 2147483648
        %v933 = vor.u32 1.1754944e-38, %v932
        %v934 = vsel %vm931, %v933, %v929
        %v935 = vmul.f32 1.0, %v934
        %v936 = vrcp.pop %v920
        %v937 = vmul.f32 %v920, %v936
        %v938 = vsub.f32 1.0, %v937
        %v939 = vmul.f32 %v936, %v938
        %v940 = vadd.f32 %v936, %v939
        %vm941 = vweird.f32 %v920
        %vm942 = vweird.f32 %v936
        %vm943 = vmor %vm941, %vm942
        %v944 = vsel %vm943, %v936, %v940
        %v945 = vand.u32 2147483647, %v920
        %vm946 = vcmp.eq.f32.partialorder %v945, 8.507059e+37
        %v947 = vand.u32 %v920, 2147483648
        %v948 = vor.u32 1.1754944e-38, %v947
        %v949 = vsel %vm946, %v948, %v944
        %v950 = vmul.f32 1.0, %v949
        %v951 = vmul.f32 %v909, %v935
        %v952 = vmul.f32 %v910, %v950
        %v953 = vpack.c.bf16 %v951, %v951
        %v954 = vpack.c.bf16 %v952, %v952
        %955 = vst [vmem:[#allocation3 + $0x10] sm:$0xf] %v953
        %956 = vst [vmem:[#allocation3 + $0x28] sm:$0xf] %v954
        %v957 = vld [vmem:[#allocation2 + $0x10] sm:$0x44]
        %v958 = vsel %vm344, 1065369472, %v957
        %959 = vst [vmem:[#allocation2 + $0x10] sm:$0x44] %v958
        %v960 = vld [vmem:[#allocation3 + $0x4] sm:$0xff]
        %v961 = vld [vmem:[#allocation3 + $0x1c] sm:$0xff]
        %964 = vrot.lane.b32.xlu0 %v960, 126
        %v965 = vpop.permute.xlu0 %964
        %966 = vrot.lane.b32.xlu0 %v961, 126
        %v967 = vpop.permute.xlu0 %966
        %v968 = vrot.slane %v965, 4
        %v969 = vrot.slane %v967, 4
        %v970 = vsel %vm353, %v965, %v968
        %v971 = vsel %vm353, %v967, %v969
        %974 = vst [vmem:[#allocation2] sm:$0xf] %v970
        %975 = vst [vmem:[#allocation2 + $0x8] sm:$0xf] %v971
        %v976 = vld [vmem:[#allocation3 + $0x34] sm:$0x33]
        %978 = vrot.lane.b32.xlu0 %v976, 126
        %v979 = vpop.permute.xlu0 %978
        %v980 = vrot.slane %v979, 4
        %v981 = vsel %vm353, %v979, %v980
        %983 = vst [vmem:[#allocation2 + $0x10] sm:$0x3] %v981
        %v984 = vld [vmem:[#allocation3 + $0x10] sm:$0xff]
        %v985 = vld [vmem:[#allocation3 + $0x28] sm:$0xff]
        %988 = vrot.lane.b32.xlu0 %v984, 126
        %v989 = vpop.permute.xlu0 %988
        %990 = vrot.lane.b32.xlu0 %v985, 126
        %v991 = vpop.permute.xlu0 %990
        %v992 = vrot.slane %v989, 4
        %v993 = vrot.slane %v991, 4
        %v994 = vsel %vm353, %v989, %v992
        %v995 = vsel %vm353, %v991, %v993
        %998 = vst [vmem:[#allocation2 + $0x4] sm:$0xf] %v994
        %999 = vst [vmem:[#allocation2 + $0xc] sm:$0xf] %v995
        %v1000 = vld [vmem:[#allocation3 + $0x40] sm:$0x33]
        %1002 = vrot.lane.b32.xlu0 %v1000, 126
        %v1003 = vpop.permute.xlu0 %1002
        %v1004 = vrot.slane %v1003, 4
        %v1005 = vsel %vm353, %v1003, %v1004
        %1007 = vst [vmem:[#allocation2 + $0x14] sm:$0x3] %v1005
        %v1008 = vld [vmem:[#allocation3 + $0x4] sm:$0xff]
        %v1009 = vld [vmem:[#allocation3 + $0x1c] sm:$0xff]
        %1012 = vrot.lane.b32.xlu0 %v1008, 127
        %v1013 = vpop.permute.xlu0 %1012
        %1014 = vrot.lane.b32.xlu0 %v1009, 127
        %v1015 = vpop.permute.xlu0 %1014
        %v1016 = vrot.slane %v1013, 4
        %v1017 = vrot.slane %v1015, 4
        %v1018 = vsel %vm386, %v1013, %v1016
        %v1019 = vsel %vm386, %v1015, %v1017
        %1022 = vst [vmem:[#allocation2 + $0x20] sm:$0xf] %v1018
        %1023 = vst [vmem:[#allocation2 + $0x28] sm:$0xf] %v1019
        %v1024 = vld [vmem:[#allocation3 + $0x34] sm:$0x33]
        %1026 = vrot.lane.b32.xlu0 %v1024, 127
        %v1027 = vpop.permute.xlu0 %1026
        %v1028 = vrot.slane %v1027, 4
        %v1029 = vsel %vm386, %v1027, %v1028
        %1031 = vst [vmem:[#allocation2 + $0x30] sm:$0x3] %v1029
        %v1032 = vld [vmem:[#allocation3 + $0x10] sm:$0xff]
        %v1033 = vld [vmem:[#allocation3 + $0x28] sm:$0xff]
        %1036 = vrot.lane.b32.xlu0 %v1032, 127
        %v1037 = vpop.permute.xlu0 %1036
        %1038 = vrot.lane.b32.xlu0 %v1033, 127
        %v1039 = vpop.permute.xlu0 %1038
        %v1040 = vrot.slane %v1037, 4
        %v1041 = vrot.slane %v1039, 4
        %v1042 = vsel %vm386, %v1037, %v1040
        %v1043 = vsel %vm386, %v1039, %v1041
        %1046 = vst [vmem:[#allocation2 + $0x24] sm:$0xf] %v1042
        %1047 = vst [vmem:[#allocation2 + $0x2c] sm:$0xf] %v1043
        %v1048 = vld [vmem:[#allocation3 + $0x40] sm:$0x33]
        %1050 = vrot.lane.b32.xlu0 %v1048, 127
        %v1051 = vpop.permute.xlu0 %1050
        %v1052 = vrot.slane %v1051, 4
        %v1053 = vsel %vm386, %v1051, %v1052
        %1055 = vst [vmem:[#allocation2 + $0x34] sm:$0x3] %v1053
        %v1056 = vld [vmem:[#allocation3 + $0x4] sm:$0xf]
        %v1057 = vld [vmem:[#allocation3 + $0x1c] sm:$0xf]
        %1058 = vst [vmem:[#allocation2 + $0x40] sm:$0xf] %v1056
        %1059 = vst [vmem:[#allocation2 + $0x48] sm:$0xf] %v1057
        %v1060 = vld [vmem:[#allocation3 + $0x34] sm:$0x3]
        %1061 = vst [vmem:[#allocation2 + $0x50] sm:$0x3] %v1060
        %v1062 = vld [vmem:[#allocation3 + $0x10] sm:$0xf]
        %v1063 = vld [vmem:[#allocation3 + $0x28] sm:$0xf]
        %1064 = vst [vmem:[#allocation2 + $0x44] sm:$0xf] %v1062
        %1065 = vst [vmem:[#allocation2 + $0x4c] sm:$0xf] %v1063
        %v1066 = vld [vmem:[#allocation3 + $0x40] sm:$0x3]
        %1067 = vst [vmem:[#allocation2 + $0x54] sm:$0x3] %v1066
        %v1068 = vld [vmem:[#allocation3] sm:$0xff]
        %v1069 = vld [vmem:[#allocation3 + $0x18] sm:$0xff]
        %1072 = vrot.lane.b32.xlu0 %v1068, 1
        %v1073 = vpop.permute.xlu0 %1072
        %1074 = vrot.lane.b32.xlu0 %v1069, 1
        %v1075 = vpop.permute.xlu0 %1074
        %v1076 = vrot.slane %v1073, 4
        %v1077 = vrot.slane %v1075, 4
        %v1078 = vsel %vm427, %v1073, %v1076
        %v1079 = vsel %vm427, %v1075, %v1077
        %1082 = vst [vmem:[#allocation2 + $0x60] sm:$0xf] %v1078
        %1083 = vst [vmem:[#allocation2 + $0x68] sm:$0xf] %v1079
        %v1084 = vld [vmem:[#allocation3 + $0x30] sm:$0x33]
        %1086 = vrot.lane.b32.xlu0 %v1084, 1
        %v1087 = vpop.permute.xlu0 %1086
        %v1088 = vrot.slane %v1087, 4
        %v1089 = vsel %vm427, %v1087, %v1088
        %1091 = vst [vmem:[#allocation2 + $0x70] sm:$0x3] %v1089
        %v1092 = vld [vmem:[#allocation3 + $0xc] sm:$0xff]
        %v1093 = vld [vmem:[#allocation3 + $0x24] sm:$0xff]
        %1096 = vrot.lane.b32.xlu0 %v1092, 1
        %v1097 = vpop.permute.xlu0 %1096
        %1098 = vrot.lane.b32.xlu0 %v1093, 1
        %v1099 = vpop.permute.xlu0 %1098
        %v1100 = vrot.slane %v1097, 4
        %v1101 = vrot.slane %v1099, 4
        %v1102 = vsel %vm427, %v1097, %v1100
        %v1103 = vsel %vm427, %v1099, %v1101
        %1106 = vst [vmem:[#allocation2 + $0x64] sm:$0xf] %v1102
        %1107 = vst [vmem:[#allocation2 + $0x6c] sm:$0xf] %v1103
        %v1108 = vld [vmem:[#allocation3 + $0x3c] sm:$0x33]
        %1110 = vrot.lane.b32.xlu0 %v1108, 1
        %v1111 = vpop.permute.xlu0 %1110
        %v1112 = vrot.slane %v1111, 4
        %v1113 = vsel %vm427, %v1111, %v1112
        %1115 = vst [vmem:[#allocation2 + $0x74] sm:$0x3] %v1113
        %v1116 = vld [vmem:[#allocation3] sm:$0xff]
        %v1117 = vld [vmem:[#allocation3 + $0x18] sm:$0xff]
        %1120 = vrot.lane.b32.xlu0 %v1116, 2
        %v1121 = vpop.permute.xlu0 %1120
        %1122 = vrot.lane.b32.xlu0 %v1117, 2
        %v1123 = vpop.permute.xlu0 %1122
        %v1124 = vrot.slane %v1121, 4
        %v1125 = vrot.slane %v1123, 4
        %v1126 = vsel %vm460, %v1121, %v1124
        %v1127 = vsel %vm460, %v1123, %v1125
        %1130 = vst [vmem:[#allocation2 + $0x80] sm:$0xf] %v1126
        %1131 = vst [vmem:[#allocation2 + $0x88] sm:$0xf] %v1127
        %v1132 = vld [vmem:[#allocation3 + $0x30] sm:$0x33]
        %1134 = vrot.lane.b32.xlu0 %v1132, 2
        %v1135 = vpop.permute.xlu0 %1134
        %v1136 = vrot.slane %v1135, 4
        %v1137 = vsel %vm460, %v1135, %v1136
        %1139 = vst [vmem:[#allocation2 + $0x90] sm:$0x3] %v1137
        %v1140 = vld [vmem:[#allocation3 + $0xc] sm:$0xff]
        %v1141 = vld [vmem:[#allocation3 + $0x24] sm:$0xff]
        %1144 = vrot.lane.b32.xlu0 %v1140, 2
        %v1145 = vpop.permute.xlu0 %1144
        %1146 = vrot.lane.b32.xlu0 %v1141, 2
        %v1147 = vpop.permute.xlu0 %1146
        %v1148 = vrot.slane %v1145, 4
        %v1149 = vrot.slane %v1147, 4
        %v1150 = vsel %vm460, %v1145, %v1148
        %v1151 = vsel %vm460, %v1147, %v1149
        %1154 = vst [vmem:[#allocation2 + $0x84] sm:$0xf] %v1150
        %1155 = vst [vmem:[#allocation2 + $0x8c] sm:$0xf] %v1151
        %v1156 = vld [vmem:[#allocation3 + $0x3c] sm:$0x33]
        %1158 = vrot.lane.b32.xlu0 %v1156, 2
        %v1159 = vpop.permute.xlu0 %1158
        %v1160 = vrot.slane %v1159, 4
        %v1161 = vsel %vm460, %v1159, %v1160
        %1163 = vst [vmem:[#allocation2 + $0x94] sm:$0x3] %v1161
        %v1164 = vld [vmem:[%s5] sm:$0xf]
        %v1165 = vld [vmem:[#allocation2] sm:$0xff]
        %v1166 = vld [vmem:[#allocation2 + $0x8] sm:$0xff]
        %v1167 = vld [vmem:[#allocation2 + $0x10] sm:$0xff]
        %v1168 = vld [vmem:[#allocation2 + $0x18] sm:$0xff]
        %v1169 = vld [vmem:[#allocation2 + $0x20] sm:$0xff]
        %v1170 = vld [vmem:[#allocation2 + $0x28] sm:$0xff]
        %v1171 = vld [vmem:[#allocation2 + $0x30] sm:$0xff]
        %v1172 = vld [vmem:[#allocation2 + $0x38] sm:$0xff]
        %v1173 = vld [vmem:[#allocation2 + $0x40] sm:$0xff]
        %v1174 = vld [vmem:[#allocation2 + $0x48] sm:$0xff]
        %v1175 = vld [vmem:[#allocation2 + $0x50] sm:$0xff]
        %v1176 = vld [vmem:[#allocation2 + $0x58] sm:$0xff]
        %v1177 = vld [vmem:[#allocation2 + $0x60] sm:$0xff]
        %v1178 = vld [vmem:[#allocation2 + $0x68] sm:$0xff]
        %v1179 = vld [vmem:[#allocation2 + $0x70] sm:$0xff]
        %v1180 = vld [vmem:[#allocation2 + $0x78] sm:$0xff]
        %v1181 = vld [vmem:[#allocation2 + $0x80] sm:$0xff]
        %v1182 = vld [vmem:[#allocation2 + $0x88] sm:$0xff]
        %v1183 = vld [vmem:[#allocation2 + $0x90] sm:$0xff]
        %v1184 = vld [vmem:[#allocation2 + $0x98] sm:$0xff]
        %1186 = vst [vmem:[#allocation1] ss:$4 sm:$0xff] %v1164
        %v1187 = vld.sshfl [vmem:[#allocation1] sm:$0xff pattern:$0x73625140]
        %v1188 = vld.sshfl [vmem:[#allocation1 + $0x8] sm:$0xff pattern:$0x73625140]
        %v1210 = vunpack.c.l.b16 %v1165
        %v1211 = vunpack.c.h.b16 %v1165
        %v1212 = vunpack.c.l.b16 %v1166
        %v1213 = vunpack.c.h.b16 %v1166
        %v1214 = vunpack.c.l.b16 %v1167
        %v1215 = vunpack.c.h.b16 %v1167
        %v1216 = vunpack.c.l.b16 %v1168
        %v1217 = vunpack.c.h.b16 %v1168
        %v1218 = vunpack.c.l.b16 %v1169
        %v1219 = vunpack.c.h.b16 %v1169
        %v1220 = vunpack.c.l.b16 %v1170
        %v1221 = vunpack.c.h.b16 %v1170
        %v1222 = vunpack.c.l.b16 %v1171
        %v1223 = vunpack.c.h.b16 %v1171
        %v1224 = vunpack.c.l.b16 %v1172
        %v1225 = vunpack.c.h.b16 %v1172
        %v1226 = vunpack.c.l.b16 %v1173
        %v1227 = vunpack.c.h.b16 %v1173
        %v1228 = vunpack.c.l.b16 %v1174
        %v1229 = vunpack.c.h.b16 %v1174
        %v1230 = vunpack.c.l.b16 %v1175
        %v1231 = vunpack.c.h.b16 %v1175
        %v1232 = vunpack.c.l.b16 %v1176
        %v1233 = vunpack.c.h.b16 %v1176
        %v1234 = vunpack.c.l.b16 %v1177
        %v1235 = vunpack.c.h.b16 %v1177
        %v1236 = vunpack.c.l.b16 %v1178
        %v1237 = vunpack.c.h.b16 %v1178
        %v1238 = vunpack.c.l.b16 %v1179
        %v1239 = vunpack.c.h.b16 %v1179
        %v1240 = vunpack.c.l.b16 %v1180
        %v1241 = vunpack.c.h.b16 %v1180
        %v1242 = vunpack.c.l.b16 %v1181
        %v1243 = vunpack.c.h.b16 %v1181
        %v1244 = vunpack.c.l.b16 %v1182
        %v1245 = vunpack.c.h.b16 %v1182
        %v1246 = vunpack.c.l.b16 %v1183
        %v1247 = vunpack.c.h.b16 %v1183
        %v1248 = vunpack.c.l.b16 %v1184
        %v1249 = vunpack.c.h.b16 %v1184
        %v1250 = vpack.c.b16 %v1212, %v1210
        %v1251 = vpack.c.b16 %v1213, %v1211
        %v1252 = vpack.c.b16 %v1216, %v1214
        %v1253 = vpack.c.b16 %v1217, %v1215
        %v1254 = vpack.c.b16 %v1220, %v1218
        %v1255 = vpack.c.b16 %v1221, %v1219
        %v1256 = vpack.c.b16 %v1224, %v1222
        %v1257 = vpack.c.b16 %v1225, %v1223
        %v1258 = vpack.c.b16 %v1228, %v1226
        %v1259 = vpack.c.b16 %v1229, %v1227
        %v1260 = vpack.c.b16 %v1232, %v1230
        %v1261 = vpack.c.b16 %v1233, %v1231
        %v1262 = vpack.c.b16 %v1236, %v1234
        %v1263 = vpack.c.b16 %v1237, %v1235
        %v1264 = vpack.c.b16 %v1240, %v1238
        %v1265 = vpack.c.b16 %v1241, %v1239
        %v1266 = vpack.c.b16 %v1244, %v1242
        %v1267 = vpack.c.b16 %v1245, %v1243
        %v1268 = vpack.c.b16 %v1248, %v1246
        %v1269 = vpack.c.b16 %v1249, %v1247
        %vm1290 = vcmask 261120
        %v1291 = vsel %vm1290, %v1188, 0
        %1293 = vmatpush.bf16.msra.mxu0 %v1264
        %1294 = vmatpush.bf16.msra.mxu0 %v1262
        %1295 = vmatpush.bf16.msra.mxu0 %v1260
        %1296 = vmatpush.bf16.msra.mxu0 %v1258
        %1297 = vmatpush.bf16.msra.mxu0 %v1256
        %1298 = vmatpush.bf16.msra.mxu0 %v1254
        %1299 = vmatpush.bf16.msra.mxu0 %v1252
        %1300 = vmatpush.bf16.msra.mxu0 %v1250
        %1301 = vmatmul.bf16.gmra.mxu0 %v1187
        %v1302 = vpop.f32.mrf.mxu0
        %v1303 = vadd.f32 0.0, %v1302
        %v1304 = vpop.f32.mrf.mxu0
        %1305 = vdwg.mxu0
        %1306 = vmatpush.bf16.msra.mxu0 0
        %1307 = vmatpush.bf16.msra.mxu0 0
        %1308 = vmatpush.bf16.msra.mxu0 0
        %1309 = vmatpush.bf16.msra.mxu0 0
        %1310 = vmatpush.bf16.msra.mxu0 0
        %1311 = vmatpush.bf16.msra.mxu0 0
        %1312 = vmatpush.bf16.msra.mxu0 %v1268
        %1313 = vmatpush.bf16.msra.mxu0 %v1266
        %1314 = vmatmul.bf16.gmra.mxu0 %v1291
        %v1315 = vpop.f32.mrf.mxu0
        %v1316 = vadd.f32 %v1303, %v1315
        %v1317 = vpop.f32.mrf.mxu0
        %1318 = vdwg.mxu0
        %1319 = vmatpush.bf16.msra.mxu0 %v1265
        %1320 = vmatpush.bf16.msra.mxu0 %v1263
        %1321 = vmatpush.bf16.msra.mxu0 %v1261
        %1322 = vmatpush.bf16.msra.mxu0 %v1259
        %1323 = vmatpush.bf16.msra.mxu0 %v1257
        %1324 = vmatpush.bf16.msra.mxu0 %v1255
        %1325 = vmatpush.bf16.msra.mxu0 %v1253
        %1326 = vmatpush.bf16.msra.mxu0 %v1251
        %1327 = vmatmul.bf16.gmra.mxu0 %v1187
        %v1328 = vpop.f32.mrf.mxu0
        %v1329 = vadd.f32 0.0, %v1328
        %v1330 = vpop.f32.mrf.mxu0
        %1331 = vdwg.mxu0
        %1332 = vmatpush.bf16.msra.mxu0 0
        %1333 = vmatpush.bf16.msra.mxu0 0
        %1334 = vmatpush.bf16.msra.mxu0 0
        %1335 = vmatpush.bf16.msra.mxu0 0
        %1336 = vmatpush.bf16.msra.mxu0 0
        %1337 = vmatpush.bf16.msra.mxu0 0
        %1338 = vmatpush.bf16.msra.mxu0 %v1269
        %1339 = vmatpush.bf16.msra.mxu0 %v1267
        %1340 = vmatmul.bf16.gmra.mxu0 %v1291
        %v1341 = vpop.f32.mrf.mxu0
        %v1342 = vadd.f32 %v1329, %v1341
        %v1343 = vpop.f32.mrf.mxu0
        %1344 = vdwg.mxu0
        %1345 = vst [vmem:[%s261] sm:$0xf] %v1316
        %s1346 = scalar_lea.vmem %s261, 4 [#allocation4]
        %1347 = vst [vmem:[%s1346] sm:$0xf] %v1342
        %s1348 = sand.u32 %s164, 1
        %s1349 = scalar_lea.sflag [#allocation5], %s1348
        %s1350 = sand.u32 %s164, 1
        %s1351 = smul.addr %s1350, 8
        %s1352 = scalar_lea.vmem [#allocation4], %s1351
        // Predicated region
        $region49: #{tpu_custom_call.1} parent=43 // pred_check
          %p1353 = pneg %p174
        $region50: #{tpu_custom_call.1} parent=43 // pred_check_branch
          %1355 = sbr.rel (%p1353) target = $region52
        $region51: #{tpu_custom_call.1} parent=43 // pred_region
          %s1356 = smul.u32 2, %s20
          %1358 = vsyncadd %s1349, 0
          %s1359 = smul.addr %s1356, 4
          %s1360 = scalar_lea.hbm %s6, %s1359
          %s1361 = sshll.u32 %s1352, 4
          %s1362 = int_to_ptr.vmem [resolvable:$true] %s1361
          %s1363 = sshll.u32 %s1360, 4
          %s1364 = int_to_ptr.hbm [resolvable:$true] %s1363
          %1369 = dma.vmem_to_hbm [thread:$0]  %s1362, 128, %s1364, %s1349, 64, 64, 4
        $region52: #{tpu_custom_call.1} parent=43 // pred_fallthru
          _
      $region44: #{tpu_custom_call.1} parent=5 // pred_fallthru
        _
      %p1370 = scmp.le.s32.totalorder 2, %s15
      // Predicated region
      $region53: #{tpu_custom_call.1} parent=5 // pred_check
        %p1371 = pneg %p1370
      $region54: #{tpu_custom_call.1} parent=5 // pred_check_branch
        %1373 = sbr.rel (%p1371) target = $region56
      $region55: #{tpu_custom_call.1} parent=5 // pred_region
        %s1374 = ssub.s32 %s15, 2
        // Predicated region
        $region57: #{tpu_custom_call.1} parent=55 // pred_check
          %p1375 = pneg %p180
        $region58: #{tpu_custom_call.1} parent=55 // pred_check_branch
          %1377 = sbr.rel (%p1375) target = $region60
        $region59: #{tpu_custom_call.1} parent=55 // pred_region
          %s1378 = sand.u32 %s165, 1
          %s1379 = scalar_lea.sflag [#allocation5], %s1378
          %s1380 = sand.u32 %s165, 1
          %s1381 = smul.addr %s1380, 8
          %s1382 = scalar_lea.vmem [#allocation4], %s1381
          %1384 = dma.done %s1379, 128
        $region60: #{tpu_custom_call.1} parent=55 // pred_fallthru
          _
      $region56: #{tpu_custom_call.1} parent=5 // pred_fallthru
        _
    $region6: #{tpu_custom_call.1} parent=1 // loop_footer
      %s19 = sadd.s32 1, %s15
    $region7: #{tpu_custom_call.1} parent=1 // loop_footer_branch
      %14 = sbr.rel target = $region3
    $region8: #{tpu_custom_call.1} parent=1 // loop_exit
      _
    %1385 = vsyncpa [#allocation5], 1
    %s1386 = scalar_lea.sflag [#allocation5], 1
    %1387 = vsyncpa %s1386, 1

</llo_original>
